<compile_context>
chip_gen: v5e
topology: v5e:2x2
jax: 0.10.0
libtpu: 0.0.40
codegen_flags: <defaults>
</compile_context>

<pallas_src>
import math
import functools

import jax
import jax.numpy as jnp
from jax.experimental import pallas as pl
from jax.experimental.pallas import tpu as pltpu

EPS = 1e-5


def _layernorm(x, gamma, beta):
    # x: (M, C) f32, gamma/beta: (1, C); biased variance, same as torch.nn.LayerNorm
    mu = jnp.mean(x, axis=-1, keepdims=True)
    var = jnp.mean((x - mu) ** 2, axis=-1, keepdims=True)
    xn = (x - mu) * jax.lax.rsqrt(var + EPS)
    return xn * gamma + beta


def _gelu_exact(x):
    # torch.nn.GELU() default (exact, erf-based) -> EUP
    return 0.5 * x * (1.0 + jax.lax.erf(x * (1.0 / math.sqrt(2.0))))


def transformer_block_kernel(
    x_ref,
    ln1_g_ref, ln1_b_ref,
    qkv_w_ref, qkv_b_ref,
    proj_w_ref, proj_b_ref,
    ln2_g_ref, ln2_b_ref,
    fc1_w_ref, fc1_b_ref,
    fc2_w_ref, fc2_b_ref,
    out_ref,
    *, num_heads, compute_dtype,
):
    Bb, N, C = x_ref.shape
    M = Bb * N
    hd = C // num_heads
    scale = hd ** (-0.5)
    cd = compute_dtype

    # Flatten the whole block to (M, C): every dense matmul sees Bb*N rows.
    x = x_ref[...].astype(jnp.float32).reshape(M, C)

    # ---- Attention branch --------------------------------------------------
    xn1 = _layernorm(x, ln1_g_ref[...], ln1_b_ref[...])

    qkv = jnp.dot(xn1.astype(cd), qkv_w_ref[...].astype(cd),
                  preferred_element_type=jnp.float32)
    qkv = qkv + qkv_b_ref[...]                       # (M, 3C), f32
    qkv3 = qkv.reshape(Bb, N, 3 * C)

    # Pre-scale q (fewer multiplies than scaling the (N,N) score matrix).
    q3 = qkv3[..., 0 * C:1 * C] * scale              # (Bb, N, C)
    k3 = qkv3[..., 1 * C:2 * C]
    v3 = qkv3[..., 2 * C:3 * C]

    # Stack heads along the leading (untiled) batch axis -> (nh*Bb, N, hd),
    # then run QK^T / softmax / PV as single batched ops.
    q_all = jnp.concatenate(
        [q3[..., h * hd:(h + 1) * hd] for h in range(num_heads)], axis=0)
    k_all = jnp.concatenate(
        [k3[..., h * hd:(h + 1) * hd] for h in range(num_heads)], axis=0)
    v_all = jnp.concatenate(
        [v3[..., h * hd:(h + 1) * hd] for h in range(num_heads)], axis=0)

    s = jnp.einsum('bqd,bkd->bqk', q_all.astype(cd), k_all.astype(cd),
                   preferred_element_type=jnp.float32)          # (nh*Bb, N, N)
    s = s - jnp.max(s, axis=-1, keepdims=True)
    p = jnp.exp(s)                                              # f32 (EUP)
    denom = jnp.sum(p, axis=-1, keepdims=True)
    p = p * pl.reciprocal(denom, approx=True)                   # divide on EUP

    o_all = jnp.einsum('bqk,bkd->bqd', p.astype(cd), v_all.astype(cd),
                       preferred_element_type=jnp.float32)      # (nh*Bb, N, hd)

    # Un-stack heads back into the channel (lane) dimension.
    attn_cat = jnp.concatenate(
        [o_all[h * Bb:(h + 1) * Bb] for h in range(num_heads)], axis=-1)
    attn_cat = attn_cat.reshape(M, C)

    attn_out = jnp.dot(attn_cat.astype(cd), proj_w_ref[...].astype(cd),
                       preferred_element_type=jnp.float32) + proj_b_ref[...]
    x1 = x + attn_out

    # ---- MLP branch --------------------------------------------------------
    xn2 = _layernorm(x1, ln2_g_ref[...], ln2_b_ref[...])
    h1 = jnp.dot(xn2.astype(cd), fc1_w_ref[...].astype(cd),
                 preferred_element_type=jnp.float32) + fc1_b_ref[...]
    h1 = _gelu_exact(h1)                                        # f32 erf (EUP)
    mlp_out = jnp.dot(h1.astype(cd), fc2_w_ref[...].astype(cd),
                      preferred_element_type=jnp.float32) + fc2_b_ref[...]

    out_ref[...] = (x1 + mlp_out).reshape(Bb, N, C).astype(out_ref.dtype)


def transformer_block(x, params, num_heads, *, block_b=None,
                      compute_dtype=jnp.float32):
    B, N, C = x.shape
    assert C % num_heads == 0

    if block_b is None:
        # Target a few hundred rows per grid step, but keep >= 2 grid steps
        # when B >= 2 so both TensorCores (v7x) get work.
        block_b = max(1, min(B, max(1, 256 // max(N, 1))))
        while B % block_b:
            block_b -= 1
        if B >= 2 and B // block_b < 2:
            block_b = max(1, B // 2)
            while B % block_b:
                block_b -= 1
    assert B % block_b == 0

    full = lambda arr: pl.BlockSpec(arr.shape, lambda b: (0,) * arr.ndim)

    kernel = functools.partial(transformer_block_kernel,
                               num_heads=num_heads, compute_dtype=compute_dtype)

    return pl.pallas_call(
        kernel,
        out_shape=jax.ShapeDtypeStruct((B, N, C), x.dtype),
        grid_spec=pltpu.PrefetchScalarGridSpec(
            num_scalar_prefetch=0,
            grid=(B // block_b,),
            in_specs=[
                pl.BlockSpec((block_b, N, C), lambda b: (b, 0, 0)),   # x
                full(params["ln1_g"]), full(params["ln1_b"]),
                full(params["qkv_w"]), full(params["qkv_b"]),
                full(params["proj_w"]), full(params["proj_b"]),
                full(params["ln2_g"]), full(params["ln2_b"]),
                full(params["fc1_w"]), full(params["fc1_b"]),
                full(params["fc2_w"]), full(params["fc2_b"]),
            ],
            out_specs=pl.BlockSpec((block_b, N, C), lambda b: (b, 0, 0)),
        ),
        compiler_params=pltpu.CompilerParams(
            dimension_semantics=("parallel",),
            vmem_limit_bytes=48 << 20,
        ),
    )(
        x,
        params["ln1_g"], params["ln1_b"],
        params["qkv_w"], params["qkv_b"],
        params["proj_w"], params["proj_b"],
        params["ln2_g"], params["ln2_b"],
        params["fc1_w"], params["fc1_b"],
        params["fc2_w"], params["fc2_b"],
    )


# ---------------------------- reference (plain JAX) --------------------------
def reference_block(x, params, num_heads):
    B, N, C = x.shape
    hd = C // num_heads
    scale = hd ** (-0.5)

    def ln(t, g, b):
        mu = jnp.mean(t, -1, keepdims=True)
        var = jnp.mean((t - mu) ** 2, -1, keepdims=True)
        return (t - mu) / jnp.sqrt(var + EPS) * g + b

    xn1 = ln(x, params["ln1_g"], params["ln1_b"])
    qkv = xn1 @ params["qkv_w"] + params["qkv_b"]                 # (B,N,3C)
    qkv = qkv.reshape(B, N, 3, num_heads, hd).transpose(2, 0, 3, 1, 4)
    q, k, v = qkv[0], qkv[1], qkv[2]                              # (B,nh,N,hd)
    att = jnp.einsum("bhqd,bhkd->bhqk", q, k) * scale
    att = jax.nn.softmax(att, axis=-1)
    o = jnp.einsum("bhqk,bhkd->bhqd", att, v)
    o = o.transpose(0, 2, 1, 3).reshape(B, N, C)
    o = o @ params["proj_w"] + params["proj_b"]
    x1 = x + o

    xn2 = ln(x1, params["ln2_g"], params["ln2_b"])
    h = xn2 @ params["fc1_w"] + params["fc1_b"]
    h = jax.nn.gelu(h, approximate=False)
    m = h @ params["fc2_w"] + params["fc2_b"]
    return x1 + m


# ---------------------------------- main -------------------------------------
if __name__ == "__main__":
    # Small but lane-dense shapes: C is a multiple of 128, N a multiple of 8.
    B, N, C = 2, 16, 128        # batch, tokens, embed_dim
    num_heads = 4               # head_dim = 32
    mlp_ratio = 4.0
    H = int(C * mlp_ratio)      # 512

    key = jax.random.PRNGKey(0)
    keys = jax.random.split(key, 9)

    # Linear weights stored as (in, out) so y = x @ W + b matches PyTorch's
    # y = x @ W_pt.T + b.  Dropout (p=0.0) is an inference no-op and omitted.
    params = {
        "ln1_g":  jnp.ones((1, C), jnp.float32),
        "ln1_b":  jnp.zeros((1, C), jnp.float32),
        "qkv_w":  0.05 * jax.random.normal(keys[0], (C, 3 * C), jnp.float32),
        "qkv_b":  0.01 * jax.random.normal(keys[1], (1, 3 * C), jnp.float32),
        "proj_w": 0.05 * jax.random.normal(keys[2], (C, C), jnp.float32),
        "proj_b": 0.01 * jax.random.normal(keys[3], (1, C), jnp.float32),
        "ln2_g":  jnp.ones((1, C), jnp.float32),
        "ln2_b":  jnp.zeros((1, C), jnp.float32),
        "fc1_w":  0.05 * jax.random.normal(keys[4], (C, H), jnp.float32),
        "fc1_b":  0.01 * jax.random.normal(keys[5], (1, H), jnp.float32),
        "fc2_w":  0.05 * jax.random.normal(keys[6], (H, C), jnp.float32),
        "fc2_b":  0.01 * jax.random.normal(keys[7], (1, C), jnp.float32),
    }

    x = jax.random.normal(keys[8], (B, N, C), jnp.float32)

    ref = reference_block(x, params, num_heads)

    # f32 MXU operands (tolerance loosened slightly because the softmax divide
    # uses the approximate EUP reciprocal).
    out_f32 = jax.block_until_ready(transformer_block(x, params, num_heads))
    assert out_f32.shape == (B, N, C)
    assert jnp.allclose(out_f32, ref, atol=1e-2, rtol=1e-2), "f32 mismatch vs reference"

    # bf16 MXU operands, f32 accumulation (looser tolerance for bf16 rounding).
    out_bf16 = jax.block_until_ready(
        transformer_block(x, params, num_heads, compute_dtype=jnp.bfloat16))
    assert jnp.allclose(out_bf16, ref, atol=5e-2, rtol=5e-2), "bf16 mismatch vs reference"

    print("KERNEL_OK")
</pallas_src>

<mosaic_0001>
module attributes {stable_mosaic.version = 11 : i64} {
  func.func @transformer_block_kernel(%arg0: i32, %arg1: memref<1x16x128xf32, #tpu.memory_space<vmem>>, %arg2: memref<1x128xf32, #tpu.memory_space<vmem>>, %arg3: memref<1x128xf32, #tpu.memory_space<vmem>>, %arg4: memref<128x384xf32, #tpu.memory_space<vmem>>, %arg5: memref<1x384xf32, #tpu.memory_space<vmem>>, %arg6: memref<128x128xf32, #tpu.memory_space<vmem>>, %arg7: memref<1x128xf32, #tpu.memory_space<vmem>>, %arg8: memref<1x128xf32, #tpu.memory_space<vmem>>, %arg9: memref<1x128xf32, #tpu.memory_space<vmem>>, %arg10: memref<128x512xf32, #tpu.memory_space<vmem>>, %arg11: memref<1x512xf32, #tpu.memory_space<vmem>>, %arg12: memref<512x128xf32, #tpu.memory_space<vmem>>, %arg13: memref<1x128xf32, #tpu.memory_space<vmem>>, %arg14: memref<1x16x128xf32, #tpu.memory_space<vmem>>) attributes {dimension_semantics = [#tpu.dimension_semantics<parallel>], iteration_bounds = array<i64: 2>, scalar_prefetch = 0 : i64, scratch_operands = 0 : i64, tpu.core_type = #tpu.core_type<tc>, window_params = [{transform_indices = @transform_0, window_bounds = array<i64: 1, 16, 128>}, {pipeline_mode = #tpu.pipeline_mode<synchronous>, transform_indices = @transform_1, window_bounds = array<i64: 1, 128>}, {pipeline_mode = #tpu.pipeline_mode<synchronous>, transform_indices = @transform_2, window_bounds = array<i64: 1, 128>}, {pipeline_mode = #tpu.pipeline_mode<synchronous>, transform_indices = @transform_3, window_bounds = array<i64: 128, 384>}, {pipeline_mode = #tpu.pipeline_mode<synchronous>, transform_indices = @transform_4, window_bounds = array<i64: 1, 384>}, {pipeline_mode = #tpu.pipeline_mode<synchronous>, transform_indices = @transform_5, window_bounds = array<i64: 128, 128>}, {pipeline_mode = #tpu.pipeline_mode<synchronous>, transform_indices = @transform_6, window_bounds = array<i64: 1, 128>}, {pipeline_mode = #tpu.pipeline_mode<synchronous>, transform_indices = @transform_7, window_bounds = array<i64: 1, 128>}, {pipeline_mode = #tpu.pipeline_mode<synchronous>, transform_indices = @transform_8, window_bounds = array<i64: 1, 128>}, {pipeline_mode = #tpu.pipeline_mode<synchronous>, transform_indices = @transform_9, window_bounds = array<i64: 128, 512>}, {pipeline_mode = #tpu.pipeline_mode<synchronous>, transform_indices = @transform_10, window_bounds = array<i64: 1, 512>}, {pipeline_mode = #tpu.pipeline_mode<synchronous>, transform_indices = @transform_11, window_bounds = array<i64: 512, 128>}, {pipeline_mode = #tpu.pipeline_mode<synchronous>, transform_indices = @transform_12, window_bounds = array<i64: 1, 128>}, {transform_indices = @transform_13, window_bounds = array<i64: 1, 16, 128>}]} {
    %c0 = arith.constant 0 : index
    %c0_0 = arith.constant 0 : index
    %c0_1 = arith.constant 0 : index
    %0 = vector.load %arg1[%c0, %c0_0, %c0_1] : memref<1x16x128xf32, #tpu.memory_space<vmem>>, vector<1x16x128xf32>
    %1 = vector.shape_cast %0 : vector<1x16x128xf32> to vector<16x128xf32>
    %c0_2 = arith.constant 0 : index
    %c0_3 = arith.constant 0 : index
    %2 = vector.load %arg2[%c0_2, %c0_3] : memref<1x128xf32, #tpu.memory_space<vmem>>, vector<1x128xf32>
    %c0_4 = arith.constant 0 : index
    %c0_5 = arith.constant 0 : index
    %3 = vector.load %arg3[%c0_4, %c0_5] : memref<1x128xf32, #tpu.memory_space<vmem>>, vector<1x128xf32>
    %cst = arith.constant dense<0.000000e+00> : vector<16xf32>
    %4 = vector.multi_reduction <add>, %1, %cst [1] : vector<16x128xf32> to vector<16xf32>
    %5 = vector.shape_cast %4 : vector<16xf32> to vector<16x1xf32>
    %cst_6 = arith.constant 1.280000e+02 : f32
    %6 = vector.broadcast %cst_6 : f32 to vector<16x1xf32>
    %7 = arith.divf %5, %6 : vector<16x1xf32>
    %8 = vector.broadcast %7 : vector<16x1xf32> to vector<16x128xf32>
    %9 = arith.subf %1, %8 : vector<16x128xf32>
    %10 = arith.mulf %9, %9 : vector<16x128xf32>
    %cst_7 = arith.constant dense<0.000000e+00> : vector<16xf32>
    %11 = vector.multi_reduction <add>, %10, %cst_7 [1] : vector<16x128xf32> to vector<16xf32>
    %12 = vector.shape_cast %11 : vector<16xf32> to vector<16x1xf32>
    %cst_8 = arith.constant 1.280000e+02 : f32
    %13 = vector.broadcast %cst_8 : f32 to vector<16x1xf32>
    %14 = arith.divf %12, %13 : vector<16x1xf32>
    %15 = vector.broadcast %7 : vector<16x1xf32> to vector<16x128xf32>
    %16 = arith.subf %1, %15 : vector<16x128xf32>
    %cst_9 = arith.constant 9.99999974E-6 : f32
    %17 = vector.broadcast %cst_9 : f32 to vector<16x1xf32>
    %18 = arith.addf %14, %17 : vector<16x1xf32>
    %19 = math.rsqrt %18 : vector<16x1xf32>
    %20 = vector.broadcast %19 : vector<16x1xf32> to vector<16x128xf32>
    %21 = arith.mulf %16, %20 : vector<16x128xf32>
    %22 = vector.broadcast %2 : vector<1x128xf32> to vector<16x128xf32>
    %23 = arith.mulf %21, %22 : vector<16x128xf32>
    %24 = vector.broadcast %3 : vector<1x128xf32> to vector<16x128xf32>
    %25 = arith.addf %23, %24 : vector<16x128xf32>
    %c0_10 = arith.constant 0 : index
    %c0_11 = arith.constant 0 : index
    %26 = vector.load %arg4[%c0_10, %c0_11] : memref<128x384xf32, #tpu.memory_space<vmem>>, vector<128x384xf32>
    %cst_12 = arith.constant dense<0.000000e+00> : vector<16x384xf32>
    %27 = tpu.matmul %25, %26, %cst_12 {dimension_numbers = #tpu.dot_dimension_numbers<[1], [0], [0], [1], [0, 0, 1, 1], [], []>} : vector<16x128xf32>, vector<128x384xf32>, vector<16x384xf32> -> vector<16x384xf32>
    %c0_13 = arith.constant 0 : index
    %c0_14 = arith.constant 0 : index
    %28 = vector.load %arg5[%c0_13, %c0_14] : memref<1x384xf32, #tpu.memory_space<vmem>>, vector<1x384xf32>
    %29 = vector.broadcast %28 : vector<1x384xf32> to vector<16x384xf32>
    %30 = arith.addf %27, %29 : vector<16x384xf32>
    %31 = vector.shape_cast %30 : vector<16x384xf32> to vector<1x16x384xf32>
    %32 = vector.extract_strided_slice %31 {offsets = [0, 0, 0], sizes = [1, 16, 128], strides = [1, 1, 1]} : vector<1x16x384xf32> to vector<1x16x128xf32>
    %cst_15 = arith.constant 0.176776692 : f32
    %33 = vector.broadcast %cst_15 : f32 to vector<1x16x128xf32>
    %34 = arith.mulf %32, %33 : vector<1x16x128xf32>
    %35 = vector.extract_strided_slice %31 {offsets = [0, 0, 128], sizes = [1, 16, 128], strides = [1, 1, 1]} : vector<1x16x384xf32> to vector<1x16x128xf32>
    %36 = vector.extract_strided_slice %31 {offsets = [0, 0, 256], sizes = [1, 16, 128], strides = [1, 1, 1]} : vector<1x16x384xf32> to vector<1x16x128xf32>
    %37 = vector.extract_strided_slice %34 {offsets = [0, 0, 0], sizes = [1, 16, 32], strides = [1, 1, 1]} : vector<1x16x128xf32> to vector<1x16x32xf32>
    %38 = vector.extract_strided_slice %34 {offsets = [0, 0, 32], sizes = [1, 16, 32], strides = [1, 1, 1]} : vector<1x16x128xf32> to vector<1x16x32xf32>
    %39 = vector.extract_strided_slice %34 {offsets = [0, 0, 64], sizes = [1, 16, 32], strides = [1, 1, 1]} : vector<1x16x128xf32> to vector<1x16x32xf32>
    %40 = vector.extract_strided_slice %34 {offsets = [0, 0, 96], sizes = [1, 16, 32], strides = [1, 1, 1]} : vector<1x16x128xf32> to vector<1x16x32xf32>
    %41 = tpu.concatenate %37, %38, %39, %40 in 0 : vector<1x16x32xf32>, vector<1x16x32xf32>, vector<1x16x32xf32>, vector<1x16x32xf32> -> vector<4x16x32xf32>
    %42 = vector.extract_strided_slice %35 {offsets = [0, 0, 0], sizes = [1, 16, 32], strides = [1, 1, 1]} : vector<1x16x128xf32> to vector<1x16x32xf32>
    %43 = vector.extract_strided_slice %35 {offsets = [0, 0, 32], sizes = [1, 16, 32], strides = [1, 1, 1]} : vector<1x16x128xf32> to vector<1x16x32xf32>
    %44 = vector.extract_strided_slice %35 {offsets = [0, 0, 64], sizes = [1, 16, 32], strides = [1, 1, 1]} : vector<1x16x128xf32> to vector<1x16x32xf32>
    %45 = vector.extract_strided_slice %35 {offsets = [0, 0, 96], sizes = [1, 16, 32], strides = [1, 1, 1]} : vector<1x16x128xf32> to vector<1x16x32xf32>
    %46 = tpu.concatenate %42, %43, %44, %45 in 0 : vector<1x16x32xf32>, vector<1x16x32xf32>, vector<1x16x32xf32>, vector<1x16x32xf32> -> vector<4x16x32xf32>
    %47 = vector.extract_strided_slice %36 {offsets = [0, 0, 0], sizes = [1, 16, 32], strides = [1, 1, 1]} : vector<1x16x128xf32> to vector<1x16x32xf32>
    %48 = vector.extract_strided_slice %36 {offsets = [0, 0, 32], sizes = [1, 16, 32], strides = [1, 1, 1]} : vector<1x16x128xf32> to vector<1x16x32xf32>
    %49 = vector.extract_strided_slice %36 {offsets = [0, 0, 64], sizes = [1, 16, 32], strides = [1, 1, 1]} : vector<1x16x128xf32> to vector<1x16x32xf32>
    %50 = vector.extract_strided_slice %36 {offsets = [0, 0, 96], sizes = [1, 16, 32], strides = [1, 1, 1]} : vector<1x16x128xf32> to vector<1x16x32xf32>
    %51 = tpu.concatenate %47, %48, %49, %50 in 0 : vector<1x16x32xf32>, vector<1x16x32xf32>, vector<1x16x32xf32>, vector<1x16x32xf32> -> vector<4x16x32xf32>
    "tpu.trace_start"() <{level = 10 : i32, message = "bqd,bkd->bqk"}> : () -> ()
    %cst_16 = arith.constant dense<0.000000e+00> : vector<4x16x16xf32>
    %52 = tpu.matmul %41, %46, %cst_16 {dimension_numbers = #tpu.dot_dimension_numbers<[2], [2], [1], [1], [0, 0, 0, 1, 1, 1], [0], [0]>} : vector<4x16x32xf32>, vector<4x16x32xf32>, vector<4x16x16xf32> -> vector<4x16x16xf32>
    "tpu.trace_stop"() : () -> ()
    %cst_17 = arith.constant dense<0xFF800000> : vector<4x16xf32>
    %53 = vector.multi_reduction <maximumf>, %52, %cst_17 [2] : vector<4x16x16xf32> to vector<4x16xf32>
    %54 = vector.shape_cast %53 : vector<4x16xf32> to vector<4x16x1xf32>
    %55 = vector.broadcast %54 : vector<4x16x1xf32> to vector<4x16x16xf32>
    %56 = arith.subf %52, %55 : vector<4x16x16xf32>
    %57 = math.exp %56 : vector<4x16x16xf32>
    %cst_18 = arith.constant dense<0.000000e+00> : vector<4x16xf32>
    %58 = vector.multi_reduction <add>, %57, %cst_18 [2] : vector<4x16x16xf32> to vector<4x16xf32>
    %59 = vector.shape_cast %58 : vector<4x16xf32> to vector<4x16x1xf32>
    %60 = tpu.reciprocal %59 {approx = true} : vector<4x16x1xf32> -> vector<4x16x1xf32>
    %61 = vector.broadcast %60 : vector<4x16x1xf32> to vector<4x16x16xf32>
    %62 = arith.mulf %57, %61 : vector<4x16x16xf32>
    "tpu.trace_start"() <{level = 10 : i32, message = "bqk,bkd->bqd"}> : () -> ()
    %cst_19 = arith.constant dense<0.000000e+00> : vector<4x16x32xf32>
    %63 = tpu.matmul %62, %51, %cst_19 {dimension_numbers = #tpu.dot_dimension_numbers<[2], [1], [1], [2], [0, 0, 0, 1, 1, 2], [0], [0]>} : vector<4x16x16xf32>, vector<4x16x32xf32>, vector<4x16x32xf32> -> vector<4x16x32xf32>
    "tpu.trace_stop"() : () -> ()
    %64 = vector.extract_strided_slice %63 {offsets = [0, 0, 0], sizes = [1, 16, 32], strides = [1, 1, 1]} : vector<4x16x32xf32> to vector<1x16x32xf32>
    %65 = vector.extract_strided_slice %63 {offsets = [1, 0, 0], sizes = [1, 16, 32], strides = [1, 1, 1]} : vector<4x16x32xf32> to vector<1x16x32xf32>
    %66 = vector.extract_strided_slice %63 {offsets = [2, 0, 0], sizes = [1, 16, 32], strides = [1, 1, 1]} : vector<4x16x32xf32> to vector<1x16x32xf32>
    %67 = vector.extract_strided_slice %63 {offsets = [3, 0, 0], sizes = [1, 16, 32], strides = [1, 1, 1]} : vector<4x16x32xf32> to vector<1x16x32xf32>
    %68 = tpu.concatenate %64, %65, %66, %67 in 2 : vector<1x16x32xf32>, vector<1x16x32xf32>, vector<1x16x32xf32>, vector<1x16x32xf32> -> vector<1x16x128xf32>
    %69 = vector.shape_cast %68 : vector<1x16x128xf32> to vector<16x128xf32>
    %c0_20 = arith.constant 0 : index
    %c0_21 = arith.constant 0 : index
    %70 = vector.load %arg6[%c0_20, %c0_21] : memref<128x128xf32, #tpu.memory_space<vmem>>, vector<128x128xf32>
    %cst_22 = arith.constant dense<0.000000e+00> : vector<16x128xf32>
    %71 = tpu.matmul %69, %70, %cst_22 {dimension_numbers = #tpu.dot_dimension_numbers<[1], [0], [0], [1], [0, 0, 1, 1], [], []>} : vector<16x128xf32>, vector<128x128xf32>, vector<16x128xf32> -> vector<16x128xf32>
    %c0_23 = arith.constant 0 : index
    %c0_24 = arith.constant 0 : index
    %72 = vector.load %arg7[%c0_23, %c0_24] : memref<1x128xf32, #tpu.memory_space<vmem>>, vector<1x128xf32>
    %73 = vector.broadcast %72 : vector<1x128xf32> to vector<16x128xf32>
    %74 = arith.addf %71, %73 : vector<16x128xf32>
    %75 = arith.addf %1, %74 : vector<16x128xf32>
    %c0_25 = arith.constant 0 : index
    %c0_26 = arith.constant 0 : index
    %76 = vector.load %arg8[%c0_25, %c0_26] : memref<1x128xf32, #tpu.memory_space<vmem>>, vector<1x128xf32>
    %c0_27 = arith.constant 0 : index
    %c0_28 = arith.constant 0 : index
    %77 = vector.load %arg9[%c0_27, %c0_28] : memref<1x128xf32, #tpu.memory_space<vmem>>, vector<1x128xf32>
    %cst_29 = arith.constant dense<0.000000e+00> : vector<16xf32>
    %78 = vector.multi_reduction <add>, %75, %cst_29 [1] : vector<16x128xf32> to vector<16xf32>
    %79 = vector.shape_cast %78 : vector<16xf32> to vector<16x1xf32>
    %cst_30 = arith.constant 1.280000e+02 : f32
    %80 = vector.broadcast %cst_30 : f32 to vector<16x1xf32>
    %81 = arith.divf %79, %80 : vector<16x1xf32>
    %82 = vector.broadcast %81 : vector<16x1xf32> to vector<16x128xf32>
    %83 = arith.subf %75, %82 : vector<16x128xf32>
    %84 = arith.mulf %83, %83 : vector<16x128xf32>
    %cst_31 = arith.constant dense<0.000000e+00> : vector<16xf32>
    %85 = vector.multi_reduction <add>, %84, %cst_31 [1] : vector<16x128xf32> to vector<16xf32>
    %86 = vector.shape_cast %85 : vector<16xf32> to vector<16x1xf32>
    %cst_32 = arith.constant 1.280000e+02 : f32
    %87 = vector.broadcast %cst_32 : f32 to vector<16x1xf32>
    %88 = arith.divf %86, %87 : vector<16x1xf32>
    %89 = vector.broadcast %81 : vector<16x1xf32> to vector<16x128xf32>
    %90 = arith.subf %75, %89 : vector<16x128xf32>
    %cst_33 = arith.constant 9.99999974E-6 : f32
    %91 = vector.broadcast %cst_33 : f32 to vector<16x1xf32>
    %92 = arith.addf %88, %91 : vector<16x1xf32>
    %93 = math.rsqrt %92 : vector<16x1xf32>
    %94 = vector.broadcast %93 : vector<16x1xf32> to vector<16x128xf32>
    %95 = arith.mulf %90, %94 : vector<16x128xf32>
    %96 = vector.broadcast %76 : vector<1x128xf32> to vector<16x128xf32>
    %97 = arith.mulf %95, %96 : vector<16x128xf32>
    %98 = vector.broadcast %77 : vector<1x128xf32> to vector<16x128xf32>
    %99 = arith.addf %97, %98 : vector<16x128xf32>
    %c0_34 = arith.constant 0 : index
    %c0_35 = arith.constant 0 : index
    %100 = vector.load %arg10[%c0_34, %c0_35] : memref<128x512xf32, #tpu.memory_space<vmem>>, vector<128x512xf32>
    %cst_36 = arith.constant dense<0.000000e+00> : vector<16x512xf32>
    %101 = tpu.matmul %99, %100, %cst_36 {dimension_numbers = #tpu.dot_dimension_numbers<[1], [0], [0], [1], [0, 0, 1, 1], [], []>} : vector<16x128xf32>, vector<128x512xf32>, vector<16x512xf32> -> vector<16x512xf32>
    %c0_37 = arith.constant 0 : index
    %c0_38 = arith.constant 0 : index
    %102 = vector.load %arg11[%c0_37, %c0_38] : memref<1x512xf32, #tpu.memory_space<vmem>>, vector<1x512xf32>
    %103 = vector.broadcast %102 : vector<1x512xf32> to vector<16x512xf32>
    %104 = arith.addf %101, %103 : vector<16x512xf32>
    %cst_39 = arith.constant 5.000000e-01 : f32
    %105 = vector.broadcast %cst_39 : f32 to vector<16x512xf32>
    %106 = arith.mulf %105, %104 : vector<16x512xf32>
    %cst_40 = arith.constant 0.707106769 : f32
    %107 = vector.broadcast %cst_40 : f32 to vector<16x512xf32>
    %108 = arith.mulf %104, %107 : vector<16x512xf32>
    %109 = math.erf %108 : vector<16x512xf32>
    %cst_41 = arith.constant 1.000000e+00 : f32
    %110 = vector.broadcast %cst_41 : f32 to vector<16x512xf32>
    %111 = arith.addf %110, %109 : vector<16x512xf32>
    %112 = arith.mulf %106, %111 : vector<16x512xf32>
    %c0_42 = arith.constant 0 : index
    %c0_43 = arith.constant 0 : index
    %113 = vector.load %arg12[%c0_42, %c0_43] : memref<512x128xf32, #tpu.memory_space<vmem>>, vector<512x128xf32>
    %cst_44 = arith.constant dense<0.000000e+00> : vector<16x128xf32>
    %114 = tpu.matmul %112, %113, %cst_44 {dimension_numbers = #tpu.dot_dimension_numbers<[1], [0], [0], [1], [0, 0, 1, 1], [], []>} : vector<16x512xf32>, vector<512x128xf32>, vector<16x128xf32> -> vector<16x128xf32>
    %c0_45 = arith.constant 0 : index
    %c0_46 = arith.constant 0 : index
    %115 = vector.load %arg13[%c0_45, %c0_46] : memref<1x128xf32, #tpu.memory_space<vmem>>, vector<1x128xf32>
    %116 = vector.broadcast %115 : vector<1x128xf32> to vector<16x128xf32>
    %117 = arith.addf %114, %116 : vector<16x128xf32>
    %118 = arith.addf %75, %117 : vector<16x128xf32>
    %119 = vector.shape_cast %118 : vector<16x128xf32> to vector<1x16x128xf32>
    %c0_47 = arith.constant 0 : index
    %c0_48 = arith.constant 0 : index
    %c0_49 = arith.constant 0 : index
    %120 = vector.load %arg14[%c0_47, %c0_48, %c0_49] : memref<1x16x128xf32, #tpu.memory_space<vmem>>, vector<1x16x128xf32>
    tpu.vector_store %arg14[%c0_47, %c0_48, %c0_49], %119 {strides = array<i32>} : memref<1x16x128xf32, #tpu.memory_space<vmem>>, vector<1x16x128xf32>,
    return
  }
  func.func @transform_0(%arg0: i32) -> (i32, i32, i32) {
    %c0_i32 = arith.constant 0 : i32
    %c0_i32_0 = arith.constant 0 : i32
    %c0_i32_1 = arith.constant 0 : i32
    return %arg0, %c0_i32, %c0_i32_0 : i32, i32, i32
  }
  func.func @transform_1(%arg0: i32) -> (i32, i32) {
    %c0_i32 = arith.constant 0 : i32
    %c0_i32_0 = arith.constant 0 : i32
    %c0_i32_1 = arith.constant 0 : i32
    return %c0_i32, %c0_i32_0 : i32, i32
  }
  func.func @transform_2(%arg0: i32) -> (i32, i32) {
    %c0_i32 = arith.constant 0 : i32
    %c0_i32_0 = arith.constant 0 : i32
    %c0_i32_1 = arith.constant 0 : i32
    return %c0_i32, %c0_i32_0 : i32, i32
  }
  func.func @transform_3(%arg0: i32) -> (i32, i32) {
    %c0_i32 = arith.constant 0 : i32
    %c0_i32_0 = arith.constant 0 : i32
    %c0_i32_1 = arith.constant 0 : i32
    return %c0_i32, %c0_i32_0 : i32, i32
  }
  func.func @transform_4(%arg0: i32) -> (i32, i32) {
    %c0_i32 = arith.constant 0 : i32
    %c0_i32_0 = arith.constant 0 : i32
    %c0_i32_1 = arith.constant 0 : i32
    return %c0_i32, %c0_i32_0 : i32, i32
  }
  func.func @transform_5(%arg0: i32) -> (i32, i32) {
    %c0_i32 = arith.constant 0 : i32
    %c0_i32_0 = arith.constant 0 : i32
    %c0_i32_1 = arith.constant 0 : i32
    return %c0_i32, %c0_i32_0 : i32, i32
  }
  func.func @transform_6(%arg0: i32) -> (i32, i32) {
    %c0_i32 = arith.constant 0 : i32
    %c0_i32_0 = arith.constant 0 : i32
    %c0_i32_1 = arith.constant 0 : i32
    return %c0_i32, %c0_i32_0 : i32, i32
  }
  func.func @transform_7(%arg0: i32) -> (i32, i32) {
    %c0_i32 = arith.constant 0 : i32
    %c0_i32_0 = arith.constant 0 : i32
    %c0_i32_1 = arith.constant 0 : i32
    return %c0_i32, %c0_i32_0 : i32, i32
  }
  func.func @transform_8(%arg0: i32) -> (i32, i32) {
    %c0_i32 = arith.constant 0 : i32
    %c0_i32_0 = arith.constant 0 : i32
    %c0_i32_1 = arith.constant 0 : i32
    return %c0_i32, %c0_i32_0 : i32, i32
  }
  func.func @transform_9(%arg0: i32) -> (i32, i32) {
    %c0_i32 = arith.constant 0 : i32
    %c0_i32_0 = arith.constant 0 : i32
    %c0_i32_1 = arith.constant 0 : i32
    return %c0_i32, %c0_i32_0 : i32, i32
  }
  func.func @transform_10(%arg0: i32) -> (i32, i32) {
    %c0_i32 = arith.constant 0 : i32
    %c0_i32_0 = arith.constant 0 : i32
    %c0_i32_1 = arith.constant 0 : i32
    return %c0_i32, %c0_i32_0 : i32, i32
  }
  func.func @transform_11(%arg0: i32) -> (i32, i32) {
    %c0_i32 = arith.constant 0 : i32
    %c0_i32_0 = arith.constant 0 : i32
    %c0_i32_1 = arith.constant 0 : i32
    return %c0_i32, %c0_i32_0 : i32, i32
  }
  func.func @transform_12(%arg0: i32) -> (i32, i32) {
    %c0_i32 = arith.constant 0 : i32
    %c0_i32_0 = arith.constant 0 : i32
    %c0_i32_1 = arith.constant 0 : i32
    return %c0_i32, %c0_i32_0 : i32, i32
  }
  func.func @transform_13(%arg0: i32) -> (i32, i32, i32) {
    %c0_i32 = arith.constant 0 : i32
    %c0_i32_0 = arith.constant 0 : i32
    %c0_i32_1 = arith.constant 0 : i32
    return %arg0, %c0_i32, %c0_i32_0 : i32, i32, i32
  }
}

</mosaic_0001>

<llo_original>
// kernel: tpu_custom_call.1
$region0: #{tpu_custom_call.1}
  #allocation0 [shape = 'u32[]', space=smem, size = 0x4, offset = 0x4, fixed_abs, tag = 'smem constant byte address 0x4 - core index']
  #allocation1 [shape = 'u32[72,128]{1,0:T(1,128)}', space=vmem, size = 0x9000, scoped, tag = 'internal scratch']
  %s0 = inlined_call_operand.hbm [shape: f32[2,16,128], index: 0, kind: input, shape index: {}]
  %s1 = inlined_call_operand.hbm [shape: f32[1,128], index: 1, kind: input, shape index: {}]
  %s2 = inlined_call_operand.hbm [shape: f32[1,128], index: 2, kind: input, shape index: {}]
  %s3 = inlined_call_operand.hbm [shape: f32[128,384], index: 3, kind: input, shape index: {}]
  %s4 = inlined_call_operand.vmem [shape: f32[1,384], index: 4, kind: input, shape index: {}]
  %s5 = inlined_call_operand.hbm [shape: f32[128,128], index: 5, kind: input, shape index: {}]
  %s6 = inlined_call_operand.hbm [shape: f32[1,128], index: 6, kind: input, shape index: {}]
  %s7 = inlined_call_operand.hbm [shape: f32[1,128], index: 7, kind: input, shape index: {}]
  %s8 = inlined_call_operand.hbm [shape: f32[1,128], index: 8, kind: input, shape index: {}]
  %s9 = inlined_call_operand.hbm [shape: f32[128,512], index: 9, kind: input, shape index: {}]
  %s10 = inlined_call_operand.vmem [shape: f32[1,512], index: 10, kind: input, shape index: {}]
  %s11 = inlined_call_operand.hbm [shape: f32[512,128], index: 11, kind: input, shape index: {}]
  %s12 = inlined_call_operand.vmem [shape: f32[1,128], index: 12, kind: input, shape index: {}]
  %s13 = inlined_call_operand.hbm [shape: f32[2,16,128], index: 13, kind: output, shape index: {}]
  %s14 = sld [smem:[#allocation0]]
  $region125: #{tpu_custom_call.1} parent=0
    _
  %s16 = ssub.s32 1, %s14
  %s17 = scalar_select 0, %s16, %s14
  $region1: #{tpu_custom_call.1} parent=0
    #allocation2 [shape = 'u8[16384]{0}', space=vmem, size = 0x4000, scoped, tag = 'input window, operand 0']
    #allocation3 [shape = 's32[2]{0}', space=sflag, size = 0x8, scoped, tag = 'scoped memory for tpu_custom_call.1']
    #allocation4 [shape = 's32[2]{0}', space=sflag, size = 0x8, scoped, tag = 'scoped memory for tpu_custom_call.1']
    #allocation5 [shape = 'u8[512]{0}', space=vmem, size = 0x400, scoped, tag = 'input window, operand 1, single buffered']
    #allocation6 [shape = 's32[1]{0}', space=sflag, size = 0x4, scoped, tag = 'scoped memory for tpu_custom_call.1']
    #allocation7 [shape = 'u8[512]{0}', space=vmem, size = 0x400, scoped, tag = 'input window, operand 2, single buffered']
    #allocation8 [shape = 'u8[196608]{0}', space=vmem, size = 0x30000, scoped, tag = 'input window, operand 3, single buffered']
    #allocation9 [shape = 's32[1]{0}', space=sflag, size = 0x4, scoped, tag = 'scoped memory for tpu_custom_call.1']
    #allocation10 [shape = 'u8[65536]{0}', space=vmem, size = 0x10000, scoped, tag = 'input window, operand 5, single buffered']
    #allocation11 [shape = 'u8[512]{0}', space=vmem, size = 0x400, scoped, tag = 'input window, operand 6, single buffered']
    #allocation12 [shape = 's32[1]{0}', space=sflag, size = 0x4, scoped, tag = 'scoped memory for tpu_custom_call.1']
    #allocation13 [shape = 'u8[512]{0}', space=vmem, size = 0x400, scoped, tag = 'input window, operand 7, single buffered']
    #allocation14 [shape = 'u8[512]{0}', space=vmem, size = 0x400, scoped, tag = 'input window, operand 8, single buffered']
    #allocation15 [shape = 's32[1]{0}', space=sflag, size = 0x4, scoped, tag = 'scoped memory for tpu_custom_call.1']
    #allocation16 [shape = 'u8[262144]{0}', space=vmem, size = 0x40000, scoped, tag = 'input window, operand 9, single buffered']
    #allocation17 [shape = 'u8[262144]{0}', space=vmem, size = 0x40000, scoped, tag = 'input window, operand 11, single buffered']
    #allocation18 [shape = 's32[1]{0}', space=sflag, size = 0x4, scoped, tag = 'scoped memory for tpu_custom_call.1']
    #allocation19 [shape = 'u8[16384]{0}', space=vmem, size = 0x4000, scoped, tag = 'output window, operand 0']
    %18 = vsyncpa [#allocation3], 0
    %s19 = scalar_lea.sflag [#allocation3], 1
    %20 = vsyncpa %s19, 0
    %21 = vsyncpa [#allocation6], 0
    %22 = vsyncpa [#allocation9], 0
    %23 = vsyncpa [#allocation12], 0
    %24 = vsyncpa [#allocation15], 0
    %25 = vsyncpa [#allocation18], 0
    %26 = vsyncpa [#allocation4], 0
    %s27 = scalar_lea.sflag [#allocation4], 1
    %28 = vsyncpa %s27, 0
    loop: start=0, step=1, limit=4
    $region2: #{tpu_custom_call.1} parent=1 // loop_pre_header
      _
    $region3: #{tpu_custom_call.1} parent=1 // loop_header
      %s30 = sphi 0, %s34
      %p31 = scmp.ge.s32.totalorder %s30, 4
      %s40 = sphi 0, %s42
      %s43 = sphi 0, %s40
      %s44 = sphi 0, %s43
      %s60 = sphi 0, %s44
      %s64 = sphi 0, %s64
      %s66 = sphi 0, %s64
      %s67 = sphi 0, %s66
      %s81 = sphi 0, %s67
      %s85 = sphi 0, %s85
      %s87 = sphi 0, %s85
      %s88 = sphi 0, %s87
      %s102 = sphi 0, %s88
      %s106 = sphi 0, %s106
      %s108 = sphi 0, %s106
      %s109 = sphi 0, %s108
      %s123 = sphi 0, %s109
      %s127 = sphi 0, %s127
      %s129 = sphi 0, %s127
      %s130 = sphi 0, %s129
      %s144 = sphi 0, %s130
      %s148 = sphi 0, %s148
      %s150 = sphi 0, %s148
      %s151 = sphi 0, %s150
      %s165 = sphi 0, %s151
      %s169 = sphi 0, %s169
      %s171 = sphi 0, %s169
      %s172 = sphi 0, %s171
      %s186 = sphi 0, %s172
      %s190 = sphi 0, %s190
      %s192 = sphi 0, %s190
      %s193 = sphi 0, %s192
      %s207 = sphi 0, %s193
      %s211 = sphi 0, %s211
      %s213 = sphi 0, %s211
      %s214 = sphi 0, %s213
      %s228 = sphi 0, %s214
      %s232 = sphi 0, %s232
      %s234 = sphi 0, %s232
      %s235 = sphi 0, %s234
      %s249 = sphi 0, %s235
      %s253 = sphi 0, %s253
      %s255 = sphi 0, %s253
      %s256 = sphi 0, %s255
      %s270 = sphi 0, %s256
      %s274 = sphi 0, %s274
      %s276 = sphi 0, %s274
      %s277 = sphi 0, %s276
      %s291 = sphi 0, %s277
      %s295 = sphi 0, %s295
      %s297 = sphi 0, %s295
      %s298 = sphi 0, %s297
      %s312 = sphi 0, %s298
      %s318 = sphi 0, %s320
      %s321 = sphi 0, %s318
      %s322 = sphi 0, %s321
      %s338 = sphi 0, %s322
    $region4: #{tpu_custom_call.1} parent=1 // loop_header_branch
      %33 = sbr.rel (%p31) target = $region8
    $region5: #{tpu_custom_call.1} parent=1 // loop_body
      %s35 = ssub.s32 %s30, 1
      %s36 = ssub.s32 %s30, 2
      %s37 = sadd.s32 %s30, 1
      %s38 = ssub.s32 %s30, %s37
      %p39 = scmp.eq.s32.totalorder %s38, 0
      %s41 = sadd.s32 %s40, 1
      %s42 = scalar_select %p39, %s40, %s41
      %p45 = pneg %p39
      %p46 = scmp.eq.s32.totalorder %s30, 1
      %p47 = por %p45, %p46
      %p48 = scmp.ne.s32.totalorder %s40, %s43
      %p49 = scmp.eq.s32.totalorder %s30, 0
      %p50 = por %p48, %p49
      %p51 = scmp.ne.s32.totalorder %s40, %s43
      %p52 = scmp.eq.s32.totalorder %s35, 1
      %p53 = por %p51, %p52
      %p54 = scmp.ne.s32.totalorder %s43, %s44
      %p55 = scmp.eq.s32.totalorder %s35, 0
      %p56 = por %p54, %p55
      %p57 = scmp.ne.s32.totalorder %s43, %s44
      %p58 = scmp.eq.s32.totalorder %s36, 1
      %p59 = por %p57, %p58
      %p61 = scmp.ne.s32.totalorder %s44, %s60
      %p62 = scmp.eq.s32.totalorder %s36, 0
      %p63 = por %p61, %p62
      %s65 = sadd.s32 %s64, 1
      %p68 = scmp.eq.s32.totalorder %s30, 1
      %p69 = scmp.ne.s32.totalorder %s64, %s66
      %p70 = scmp.eq.s32.totalorder %s30, 0
      %p71 = por %p69, %p70
      %p72 = scmp.ne.s32.totalorder %s64, %s66
      %p73 = scmp.eq.s32.totalorder %s35, 1
      %p74 = por %p72, %p73
      %p75 = scmp.ne.s32.totalorder %s66, %s67
      %p76 = scmp.eq.s32.totalorder %s35, 0
      %p77 = por %p75, %p76
      %p78 = scmp.ne.s32.totalorder %s66, %s67
      %p79 = scmp.eq.s32.totalorder %s36, 1
      %p80 = por %p78, %p79
      %p82 = scmp.ne.s32.totalorder %s67, %s81
      %p83 = scmp.eq.s32.totalorder %s36, 0
      %p84 = por %p82, %p83
      %s86 = sadd.s32 %s85, 1
      %p89 = scmp.eq.s32.totalorder %s30, 1
      %p90 = scmp.ne.s32.totalorder %s85, %s87
      %p91 = scmp.eq.s32.totalorder %s30, 0
      %p92 = por %p90, %p91
      %p93 = scmp.ne.s32.totalorder %s85, %s87
      %p94 = scmp.eq.s32.totalorder %s35, 1
      %p95 = por %p93, %p94
      %p96 = scmp.ne.s32.totalorder %s87, %s88
      %p97 = scmp.eq.s32.totalorder %s35, 0
      %p98 = por %p96, %p97
      %p99 = scmp.ne.s32.totalorder %s87, %s88
      %p100 = scmp.eq.s32.totalorder %s36, 1
      %p101 = por %p99, %p100
      %p103 = scmp.ne.s32.totalorder %s88, %s102
      %p104 = scmp.eq.s32.totalorder %s36, 0
      %p105 = por %p103, %p104
      %s107 = sadd.s32 %s106, 1
      %p110 = scmp.eq.s32.totalorder %s30, 1
      %p111 = scmp.ne.s32.totalorder %s106, %s108
      %p112 = scmp.eq.s32.totalorder %s30, 0
      %p113 = por %p111, %p112
      %p114 = scmp.ne.s32.totalorder %s106, %s108
      %p115 = scmp.eq.s32.totalorder %s35, 1
      %p116 = por %p114, %p115
      %p117 = scmp.ne.s32.totalorder %s108, %s109
      %p118 = scmp.eq.s32.totalorder %s35, 0
      %p119 = por %p117, %p118
      %p120 = scmp.ne.s32.totalorder %s108, %s109
      %p121 = scmp.eq.s32.totalorder %s36, 1
      %p122 = por %p120, %p121
      %p124 = scmp.ne.s32.totalorder %s109, %s123
      %p125 = scmp.eq.s32.totalorder %s36, 0
      %p126 = por %p124, %p125
      %s128 = sadd.s32 %s127, 1
      %p131 = scmp.eq.s32.totalorder %s30, 1
      %p132 = scmp.ne.s32.totalorder %s127, %s129
      %p133 = scmp.eq.s32.totalorder %s30, 0
      %p134 = por %p132, %p133
      %p135 = scmp.ne.s32.totalorder %s127, %s129
      %p136 = scmp.eq.s32.totalorder %s35, 1
      %p137 = por %p135, %p136
      %p138 = scmp.ne.s32.totalorder %s129, %s130
      %p139 = scmp.eq.s32.totalorder %s35, 0
      %p140 = por %p138, %p139
      %p141 = scmp.ne.s32.totalorder %s129, %s130
      %p142 = scmp.eq.s32.totalorder %s36, 1
      %p143 = por %p141, %p142
      %p145 = scmp.ne.s32.totalorder %s130, %s144
      %p146 = scmp.eq.s32.totalorder %s36, 0
      %p147 = por %p145, %p146
      %s149 = sadd.s32 %s148, 1
      %p152 = scmp.eq.s32.totalorder %s30, 1
      %p153 = scmp.ne.s32.totalorder %s148, %s150
      %p154 = scmp.eq.s32.totalorder %s30, 0
      %p155 = por %p153, %p154
      %p156 = scmp.ne.s32.totalorder %s148, %s150
      %p157 = scmp.eq.s32.totalorder %s35, 1
      %p158 = por %p156, %p157
      %p159 = scmp.ne.s32.totalorder %s150, %s151
      %p160 = scmp.eq.s32.totalorder %s35, 0
      %p161 = por %p159, %p160
      %p162 = scmp.ne.s32.totalorder %s150, %s151
      %p163 = scmp.eq.s32.totalorder %s36, 1
      %p164 = por %p162, %p163
      %p166 = scmp.ne.s32.totalorder %s151, %s165
      %p167 = scmp.eq.s32.totalorder %s36, 0
      %p168 = por %p166, %p167
      %s170 = sadd.s32 %s169, 1
      %p173 = scmp.eq.s32.totalorder %s30, 1
      %p174 = scmp.ne.s32.totalorder %s169, %s171
      %p175 = scmp.eq.s32.totalorder %s30, 0
      %p176 = por %p174, %p175
      %p177 = scmp.ne.s32.totalorder %s169, %s171
      %p178 = scmp.eq.s32.totalorder %s35, 1
      %p179 = por %p177, %p178
      %p180 = scmp.ne.s32.totalorder %s171, %s172
      %p181 = scmp.eq.s32.totalorder %s35, 0
      %p182 = por %p180, %p181
      %p183 = scmp.ne.s32.totalorder %s171, %s172
      %p184 = scmp.eq.s32.totalorder %s36, 1
      %p185 = por %p183, %p184
      %p187 = scmp.ne.s32.totalorder %s172, %s186
      %p188 = scmp.eq.s32.totalorder %s36, 0
      %p189 = por %p187, %p188
      %s191 = sadd.s32 %s190, 1
      %p194 = scmp.eq.s32.totalorder %s30, 1
      %p195 = scmp.ne.s32.totalorder %s190, %s192
      %p196 = scmp.eq.s32.totalorder %s30, 0
      %p197 = por %p195, %p196
      %p198 = scmp.ne.s32.totalorder %s190, %s192
      %p199 = scmp.eq.s32.totalorder %s35, 1
      %p200 = por %p198, %p199
      %p201 = scmp.ne.s32.totalorder %s192, %s193
      %p202 = scmp.eq.s32.totalorder %s35, 0
      %p203 = por %p201, %p202
      %p204 = scmp.ne.s32.totalorder %s192, %s193
      %p205 = scmp.eq.s32.totalorder %s36, 1
      %p206 = por %p204, %p205
      %p208 = scmp.ne.s32.totalorder %s193, %s207
      %p209 = scmp.eq.s32.totalorder %s36, 0
      %p210 = por %p208, %p209
      %s212 = sadd.s32 %s211, 1
      %p215 = scmp.eq.s32.totalorder %s30, 1
      %p216 = scmp.ne.s32.totalorder %s211, %s213
      %p217 = scmp.eq.s32.totalorder %s30, 0
      %p218 = por %p216, %p217
      %p219 = scmp.ne.s32.totalorder %s211, %s213
      %p220 = scmp.eq.s32.totalorder %s35, 1
      %p221 = por %p219, %p220
      %p222 = scmp.ne.s32.totalorder %s213, %s214
      %p223 = scmp.eq.s32.totalorder %s35, 0
      %p224 = por %p222, %p223
      %p225 = scmp.ne.s32.totalorder %s213, %s214
      %p226 = scmp.eq.s32.totalorder %s36, 1
      %p227 = por %p225, %p226
      %p229 = scmp.ne.s32.totalorder %s214, %s228
      %p230 = scmp.eq.s32.totalorder %s36, 0
      %p231 = por %p229, %p230
      %s233 = sadd.s32 %s232, 1
      %p236 = scmp.eq.s32.totalorder %s30, 1
      %p237 = scmp.ne.s32.totalorder %s232, %s234
      %p238 = scmp.eq.s32.totalorder %s30, 0
      %p239 = por %p237, %p238
      %p240 = scmp.ne.s32.totalorder %s232, %s234
      %p241 = scmp.eq.s32.totalorder %s35, 1
      %p242 = por %p240, %p241
      %p243 = scmp.ne.s32.totalorder %s234, %s235
      %p244 = scmp.eq.s32.totalorder %s35, 0
      %p245 = por %p243, %p244
      %p246 = scmp.ne.s32.totalorder %s234, %s235
      %p247 = scmp.eq.s32.totalorder %s36, 1
      %p248 = por %p246, %p247
      %p250 = scmp.ne.s32.totalorder %s235, %s249
      %p251 = scmp.eq.s32.totalorder %s36, 0
      %p252 = por %p250, %p251
      %s254 = sadd.s32 %s253, 1
      %p257 = scmp.eq.s32.totalorder %s30, 1
      %p258 = scmp.ne.s32.totalorder %s253, %s255
      %p259 = scmp.eq.s32.totalorder %s30, 0
      %p260 = por %p258, %p259
      %p261 = scmp.ne.s32.totalorder %s253, %s255
      %p262 = scmp.eq.s32.totalorder %s35, 1
      %p263 = por %p261, %p262
      %p264 = scmp.ne.s32.totalorder %s255, %s256
      %p265 = scmp.eq.s32.totalorder %s35, 0
      %p266 = por %p264, %p265
      %p267 = scmp.ne.s32.totalorder %s255, %s256
      %p268 = scmp.eq.s32.totalorder %s36, 1
      %p269 = por %p267, %p268
      %p271 = scmp.ne.s32.totalorder %s256, %s270
      %p272 = scmp.eq.s32.totalorder %s36, 0
      %p273 = por %p271, %p272
      %s275 = sadd.s32 %s274, 1
      %p278 = scmp.eq.s32.totalorder %s30, 1
      %p279 = scmp.ne.s32.totalorder %s274, %s276
      %p280 = scmp.eq.s32.totalorder %s30, 0
      %p281 = por %p279, %p280
      %p282 = scmp.ne.s32.totalorder %s274, %s276
      %p283 = scmp.eq.s32.totalorder %s35, 1
      %p284 = por %p282, %p283
      %p285 = scmp.ne.s32.totalorder %s276, %s277
      %p286 = scmp.eq.s32.totalorder %s35, 0
      %p287 = por %p285, %p286
      %p288 = scmp.ne.s32.totalorder %s276, %s277
      %p289 = scmp.eq.s32.totalorder %s36, 1
      %p290 = por %p288, %p289
      %p292 = scmp.ne.s32.totalorder %s277, %s291
      %p293 = scmp.eq.s32.totalorder %s36, 0
      %p294 = por %p292, %p293
      %s296 = sadd.s32 %s295, 1
      %p299 = scmp.eq.s32.totalorder %s30, 1
      %p300 = scmp.ne.s32.totalorder %s295, %s297
      %p301 = scmp.eq.s32.totalorder %s30, 0
      %p302 = por %p300, %p301
      %p303 = scmp.ne.s32.totalorder %s295, %s297
      %p304 = scmp.eq.s32.totalorder %s35, 1
      %p305 = por %p303, %p304
      %p306 = scmp.ne.s32.totalorder %s297, %s298
      %p307 = scmp.eq.s32.totalorder %s35, 0
      %p308 = por %p306, %p307
      %p309 = scmp.ne.s32.totalorder %s297, %s298
      %p310 = scmp.eq.s32.totalorder %s36, 1
      %p311 = por %p309, %p310
      %p313 = scmp.ne.s32.totalorder %s298, %s312
      %p314 = scmp.eq.s32.totalorder %s36, 0
      %p315 = por %p313, %p314
      %s316 = ssub.s32 %s30, %s37
      %p317 = scmp.eq.s32.totalorder %s316, 0
      %s319 = sadd.s32 %s318, 1
      %s320 = scalar_select %p317, %s318, %s319
      %p323 = pneg %p317
      %p324 = scmp.eq.s32.totalorder %s30, 1
      %p325 = por %p323, %p324
      %p326 = scmp.ne.s32.totalorder %s318, %s321
      %p327 = scmp.eq.s32.totalorder %s30, 0
      %p328 = por %p326, %p327
      %p329 = scmp.ne.s32.totalorder %s318, %s321
      %p330 = scmp.eq.s32.totalorder %s35, 1
      %p331 = por %p329, %p330
      %p332 = scmp.ne.s32.totalorder %s321, %s322
      %p333 = scmp.eq.s32.totalorder %s35, 0
      %p334 = por %p332, %p333
      %p335 = scmp.ne.s32.totalorder %s321, %s322
      %p336 = scmp.eq.s32.totalorder %s36, 1
      %p337 = por %p335, %p336
      %p339 = scmp.ne.s32.totalorder %s322, %s338
      %p340 = scmp.eq.s32.totalorder %s36, 0
      %p341 = por %p339, %p340
      %p342 = scmp.le.s32.totalorder 1, %s30
      %p343 = scmp.lt.s32.totalorder %s30, 3
      %p344 = pnand %p342, %p343
      %p345 = pneg %p344
      // Predicated region
      $region9: #{tpu_custom_call.1} parent=5 // pred_check
        _
      $region10: #{tpu_custom_call.1} parent=5 // pred_check_branch
        %347 = sbr.rel (%p344) target = $region12
      $region11: #{tpu_custom_call.1} parent=5 // pred_region
        %s348 = ssub.s32 %s30, 1
        // Predicated region
        $region13: #{tpu_custom_call.1} parent=11 // pred_check
          %p349 = pneg %p77
        $region14: #{tpu_custom_call.1} parent=11 // pred_check_branch
          %351 = sbr.rel (%p349) target = $region16
        $region15: #{tpu_custom_call.1} parent=11 // pred_region
          %353 = vsyncadd [#allocation6], 0
          %s355 = sshll.u32 %s1, 4
          %s356 = int_to_ptr.hbm [resolvable:$true] %s355
          %s357 = sshll.u32 [#allocation5], 4
          %s358 = int_to_ptr.vmem [resolvable:$true] %s357
          %360 = dma.hbm_to_vmem [thread:$0]  %s356, 16, %s358, [#allocation6]
        $region16: #{tpu_custom_call.1} parent=11 // pred_fallthru
          _
        // Predicated region
        $region17: #{tpu_custom_call.1} parent=11 // pred_check
          %p361 = pneg %p98
        $region18: #{tpu_custom_call.1} parent=11 // pred_check_branch
          %363 = sbr.rel (%p361) target = $region20
        $region19: #{tpu_custom_call.1} parent=11 // pred_region
          %365 = vsyncadd [#allocation6], 0
          %s367 = sshll.u32 %s2, 4
          %s368 = int_to_ptr.hbm [resolvable:$true] %s367
          %s369 = sshll.u32 [#allocation7], 4
          %s370 = int_to_ptr.vmem [resolvable:$true] %s369
          %372 = dma.hbm_to_vmem [thread:$0]  %s368, 16, %s370, [#allocation6]
        $region20: #{tpu_custom_call.1} parent=11 // pred_fallthru
          _
        // Predicated region
        $region21: #{tpu_custom_call.1} parent=11 // pred_check
          %p373 = pneg %p119
        $region22: #{tpu_custom_call.1} parent=11 // pred_check_branch
          %375 = sbr.rel (%p373) target = $region24
        $region23: #{tpu_custom_call.1} parent=11 // pred_region
          %377 = vsyncadd [#allocation9], 0
          %s378 = sshll.u32 %s3, 4
          %s379 = int_to_ptr.hbm [resolvable:$true] %s378
          %s380 = sshll.u32 [#allocation8], 4
          %s381 = int_to_ptr.vmem [resolvable:$true] %s380
          %386 = dma.hbm_to_vmem [thread:$0]  %s379, 6144, %s381, [#allocation9], 384, 384, 24
        $region24: #{tpu_custom_call.1} parent=11 // pred_fallthru
          _
        // Predicated region
        $region25: #{tpu_custom_call.1} parent=11 // pred_check
          %p387 = pneg %p140
        $region26: #{tpu_custom_call.1} parent=11 // pred_check_branch
          %389 = sbr.rel (%p387) target = $region28
        $region27: #{tpu_custom_call.1} parent=11 // pred_region
          _
        $region28: #{tpu_custom_call.1} parent=11 // pred_fallthru
          _
        // Predicated region
        $region29: #{tpu_custom_call.1} parent=11 // pred_check
          %p390 = pneg %p161
        $region30: #{tpu_custom_call.1} parent=11 // pred_check_branch
          %392 = sbr.rel (%p390) target = $region32
        $region31: #{tpu_custom_call.1} parent=11 // pred_region
          %394 = vsyncadd [#allocation9], 0
          %s395 = sshll.u32 %s5, 4
          %s396 = int_to_ptr.hbm [resolvable:$true] %s395
          %s397 = sshll.u32 [#allocation10], 4
          %s398 = int_to_ptr.vmem [resolvable:$true] %s397
          %403 = dma.hbm_to_vmem [thread:$0]  %s396, 2048, %s398, [#allocation9], 128, 128, 8
        $region32: #{tpu_custom_call.1} parent=11 // pred_fallthru
          _
        // Predicated region
        $region33: #{tpu_custom_call.1} parent=11 // pred_check
          %p404 = pneg %p182
        $region34: #{tpu_custom_call.1} parent=11 // pred_check_branch
          %406 = sbr.rel (%p404) target = $region36
        $region35: #{tpu_custom_call.1} parent=11 // pred_region
          %408 = vsyncadd [#allocation12], 0
          %s410 = sshll.u32 %s6, 4
          %s411 = int_to_ptr.hbm [resolvable:$true] %s410
          %s412 = sshll.u32 [#allocation11], 4
          %s413 = int_to_ptr.vmem [resolvable:$true] %s412
          %415 = dma.hbm_to_vmem [thread:$0]  %s411, 16, %s413, [#allocation12]
        $region36: #{tpu_custom_call.1} parent=11 // pred_fallthru
          _
        // Predicated region
        $region37: #{tpu_custom_call.1} parent=11 // pred_check
          %p416 = pneg %p203
        $region38: #{tpu_custom_call.1} parent=11 // pred_check_branch
          %418 = sbr.rel (%p416) target = $region40
        $region39: #{tpu_custom_call.1} parent=11 // pred_region
          %420 = vsyncadd [#allocation12], 0
          %s422 = sshll.u32 %s7, 4
          %s423 = int_to_ptr.hbm [resolvable:$true] %s422
          %s424 = sshll.u32 [#allocation13], 4
          %s425 = int_to_ptr.vmem [resolvable:$true] %s424
          %427 = dma.hbm_to_vmem [thread:$0]  %s423, 16, %s425, [#allocation12]
        $region40: #{tpu_custom_call.1} parent=11 // pred_fallthru
          _
        // Predicated region
        $region41: #{tpu_custom_call.1} parent=11 // pred_check
          %p428 = pneg %p224
        $region42: #{tpu_custom_call.1} parent=11 // pred_check_branch
          %430 = sbr.rel (%p428) target = $region44
        $region43: #{tpu_custom_call.1} parent=11 // pred_region
          %432 = vsyncadd [#allocation15], 0
          %s434 = sshll.u32 %s8, 4
          %s435 = int_to_ptr.hbm [resolvable:$true] %s434
          %s436 = sshll.u32 [#allocation14], 4
          %s437 = int_to_ptr.vmem [resolvable:$true] %s436
          %439 = dma.hbm_to_vmem [thread:$0]  %s435, 16, %s437, [#allocation15]
        $region44: #{tpu_custom_call.1} parent=11 // pred_fallthru
          _
        // Predicated region
        $region45: #{tpu_custom_call.1} parent=11 // pred_check
          %p440 = pneg %p245
        $region46: #{tpu_custom_call.1} parent=11 // pred_check_branch
          %442 = sbr.rel (%p440) target = $region48
        $region47: #{tpu_custom_call.1} parent=11 // pred_region
          %444 = vsyncadd [#allocation15], 0
          %s445 = sshll.u32 %s9, 4
          %s446 = int_to_ptr.hbm [resolvable:$true] %s445
          %s447 = sshll.u32 [#allocation16], 4
          %s448 = int_to_ptr.vmem [resolvable:$true] %s447
          %453 = dma.hbm_to_vmem [thread:$0]  %s446, 8192, %s448, [#allocation15], 512, 512, 32
        $region48: #{tpu_custom_call.1} parent=11 // pred_fallthru
          _
        // Predicated region
        $region49: #{tpu_custom_call.1} parent=11 // pred_check
          %p454 = pneg %p266
        $region50: #{tpu_custom_call.1} parent=11 // pred_check_branch
          %456 = sbr.rel (%p454) target = $region52
        $region51: #{tpu_custom_call.1} parent=11 // pred_region
          _
        $region52: #{tpu_custom_call.1} parent=11 // pred_fallthru
          _
        // Predicated region
        $region53: #{tpu_custom_call.1} parent=11 // pred_check
          %p457 = pneg %p287
        $region54: #{tpu_custom_call.1} parent=11 // pred_check_branch
          %459 = sbr.rel (%p457) target = $region56
        $region55: #{tpu_custom_call.1} parent=11 // pred_region
          %461 = vsyncadd [#allocation18], 0
          %s462 = sshll.u32 %s11, 4
          %s463 = int_to_ptr.hbm [resolvable:$true] %s462
          %s464 = sshll.u32 [#allocation17], 4
          %s465 = int_to_ptr.vmem [resolvable:$true] %s464
          %470 = dma.hbm_to_vmem [thread:$0]  %s463, 8192, %s465, [#allocation18], 128, 128, 8
        $region56: #{tpu_custom_call.1} parent=11 // pred_fallthru
          _
        // Predicated region
        $region57: #{tpu_custom_call.1} parent=11 // pred_check
          %p471 = pneg %p308
        $region58: #{tpu_custom_call.1} parent=11 // pred_check_branch
          %473 = sbr.rel (%p471) target = $region60
        $region59: #{tpu_custom_call.1} parent=11 // pred_region
          _
        $region60: #{tpu_custom_call.1} parent=11 // pred_fallthru
          _
      $region12: #{tpu_custom_call.1} parent=5 // pred_fallthru
        _
      %p474 = scmp.lt.s32.totalorder %s30, 2
      // Predicated region
      $region61: #{tpu_custom_call.1} parent=5 // pred_check
        %p475 = pneg %p474
      $region62: #{tpu_custom_call.1} parent=5 // pred_check_branch
        %477 = sbr.rel (%p475) target = $region64
      $region63: #{tpu_custom_call.1} parent=5 // pred_region
        // Predicated region
        $region65: #{tpu_custom_call.1} parent=63 // pred_check
          %p478 = pneg %p50
        $region66: #{tpu_custom_call.1} parent=63 // pred_check_branch
          %480 = sbr.rel (%p478) target = $region68
        $region67: #{tpu_custom_call.1} parent=63 // pred_region
          %s481 = sand.u32 %s40, 1
          %s482 = scalar_lea.sflag [#allocation3], %s481
          %s483 = sand.u32 %s40, 1
          %s484 = smul.addr %s483, 16
          %s485 = scalar_lea.vmem [#allocation2], %s484
          %487 = vsyncadd %s482, 0
          %s488 = smul.addr %s30, 2
          %s489 = smul.addr %s488, 8
          %s490 = scalar_lea.hbm %s0, %s489
          %s491 = sshll.u32 %s490, 4
          %s492 = int_to_ptr.hbm [resolvable:$true] %s491
          %s493 = sshll.u32 %s485, 4
          %s494 = int_to_ptr.vmem [resolvable:$true] %s493
          %499 = dma.hbm_to_vmem [thread:$0]  %s492, 256, %s494, %s482, 128, 128, 8
        $region68: #{tpu_custom_call.1} parent=63 // pred_fallthru
          _
      $region64: #{tpu_custom_call.1} parent=5 // pred_fallthru
        _
      %p500 = scmp.le.s32.totalorder 1, %s30
      %p501 = scmp.lt.s32.totalorder %s30, 3
      %p502 = pnand %p500, %p501
      %p503 = pneg %p502
      // Predicated region
      $region69: #{tpu_custom_call.1} parent=5 // pred_check
        _
      $region70: #{tpu_custom_call.1} parent=5 // pred_check_branch
        %505 = sbr.rel (%p502) target = $region72
      $region71: #{tpu_custom_call.1} parent=5 // pred_region
        %s506 = ssub.s32 %s30, 1
        %s507 = sand.u32 %s43, 1
        %s508 = scalar_lea.sflag [#allocation3], %s507
        %s509 = sand.u32 %s43, 1
        %s510 = smul.addr %s509, 16
        %s511 = scalar_lea.vmem [#allocation2], %s510
        // Predicated region
        $region73: #{tpu_custom_call.1} parent=71 // pred_check
          %p512 = pneg %p56
        $region74: #{tpu_custom_call.1} parent=71 // pred_check_branch
          %514 = sbr.rel (%p512) target = $region76
        $region75: #{tpu_custom_call.1} parent=71 // pred_region
          %516 = dma.done %s508, 256
        $region76: #{tpu_custom_call.1} parent=71 // pred_fallthru
          _
        // Predicated region
        $region77: #{tpu_custom_call.1} parent=71 // pred_check
          %p517 = pneg %p77
        $region78: #{tpu_custom_call.1} parent=71 // pred_check_branch
          %519 = sbr.rel (%p517) target = $region80
        $region79: #{tpu_custom_call.1} parent=71 // pred_region
          %521 = dma.done [#allocation6], 16
        $region80: #{tpu_custom_call.1} parent=71 // pred_fallthru
          _
        // Predicated region
        $region81: #{tpu_custom_call.1} parent=71 // pred_check
          %p522 = pneg %p98
        $region82: #{tpu_custom_call.1} parent=71 // pred_check_branch
          %524 = sbr.rel (%p522) target = $region84
        $region83: #{tpu_custom_call.1} parent=71 // pred_region
          %526 = dma.done [#allocation6], 16
        $region84: #{tpu_custom_call.1} parent=71 // pred_fallthru
          _
        // Predicated region
        $region85: #{tpu_custom_call.1} parent=71 // pred_check
          %p527 = pneg %p119
        $region86: #{tpu_custom_call.1} parent=71 // pred_check_branch
          %529 = sbr.rel (%p527) target = $region88
        $region87: #{tpu_custom_call.1} parent=71 // pred_region
          %531 = dma.done [#allocation9], 6144
        $region88: #{tpu_custom_call.1} parent=71 // pred_fallthru
          _
        // Predicated region
        $region89: #{tpu_custom_call.1} parent=71 // pred_check
          %p532 = pneg %p161
        $region90: #{tpu_custom_call.1} parent=71 // pred_check_branch
          %534 = sbr.rel (%p532) target = $region92
        $region91: #{tpu_custom_call.1} parent=71 // pred_region
          %536 = dma.done [#allocation9], 2048
        $region92: #{tpu_custom_call.1} parent=71 // pred_fallthru
          _
        // Predicated region
        $region93: #{tpu_custom_call.1} parent=71 // pred_check
          %p537 = pneg %p182
        $region94: #{tpu_custom_call.1} parent=71 // pred_check_branch
          %539 = sbr.rel (%p537) target = $region96
        $region95: #{tpu_custom_call.1} parent=71 // pred_region
          %541 = dma.done [#allocation12], 16
        $region96: #{tpu_custom_call.1} parent=71 // pred_fallthru
          _
        // Predicated region
        $region97: #{tpu_custom_call.1} parent=71 // pred_check
          %p542 = pneg %p203
        $region98: #{tpu_custom_call.1} parent=71 // pred_check_branch
          %544 = sbr.rel (%p542) target = $region100
        $region99: #{tpu_custom_call.1} parent=71 // pred_region
          %546 = dma.done [#allocation12], 16
        $region100: #{tpu_custom_call.1} parent=71 // pred_fallthru
          _
        // Predicated region
        $region101: #{tpu_custom_call.1} parent=71 // pred_check
          %p547 = pneg %p224
        $region102: #{tpu_custom_call.1} parent=71 // pred_check_branch
          %549 = sbr.rel (%p547) target = $region104
        $region103: #{tpu_custom_call.1} parent=71 // pred_region
          %551 = dma.done [#allocation15], 16
        $region104: #{tpu_custom_call.1} parent=71 // pred_fallthru
          _
        // Predicated region
        $region105: #{tpu_custom_call.1} parent=71 // pred_check
          %p552 = pneg %p245
        $region106: #{tpu_custom_call.1} parent=71 // pred_check_branch
          %554 = sbr.rel (%p552) target = $region108
        $region107: #{tpu_custom_call.1} parent=71 // pred_region
          %556 = dma.done [#allocation15], 8192
        $region108: #{tpu_custom_call.1} parent=71 // pred_fallthru
          _
        // Predicated region
        $region109: #{tpu_custom_call.1} parent=71 // pred_check
          %p557 = pneg %p287
        $region110: #{tpu_custom_call.1} parent=71 // pred_check_branch
          %559 = sbr.rel (%p557) target = $region112
        $region111: #{tpu_custom_call.1} parent=71 // pred_region
          %561 = dma.done [#allocation18], 8192
        $region112: #{tpu_custom_call.1} parent=71 // pred_fallthru
          _
        %s562 = sand.u32 %s43, 1
        %s563 = scalar_lea.sflag [#allocation3], %s562
        %s564 = sand.u32 %s43, 1
        %s565 = smul.addr %s564, 16
        %s566 = scalar_lea.vmem [#allocation2], %s565
        %p567 = pneg %p56
        %p568 = pneg %p53
        %p569 = pneg %p77
        %p570 = pneg %p74
        %p571 = pneg %p98
        %p572 = pneg %p95
        %p573 = pneg %p119
        %p574 = pneg %p116
        %p575 = pneg %p140
        %p576 = pneg %p137
        %p577 = pneg %p161
        %p578 = pneg %p158
        %p579 = pneg %p182
        %p580 = pneg %p179
        %p581 = pneg %p203
        %p582 = pneg %p200
        %p583 = pneg %p224
        %p584 = pneg %p221
        %p585 = pneg %p245
        %p586 = pneg %p242
        %p587 = pneg %p266
        %p588 = pneg %p263
        %p589 = pneg %p287
        %p590 = pneg %p284
        %p591 = pneg %p308
        %p592 = pneg %p305
        %p593 = pneg %p334
        %p594 = pneg %p331
        %s595 = sand.u32 %s321, 1
        %s596 = scalar_lea.sflag [#allocation4], %s595
        %s597 = sand.u32 %s321, 1
        %s598 = smul.addr %s597, 16
        %s599 = scalar_lea.vmem [#allocation19], %s598
        %v600 = vld [vmem:[%s511] sm:$0xff]
        %v601 = vld [vmem:[%s511 + $0x8] sm:$0xff]
        %v602 = vld [vmem:[#allocation5] sm:$0x1]
        %v603 = vld [vmem:[#allocation7] sm:$0x1]
        %604 = vadd.xlane.f32.xlu0 %v600
        %v605 = vpop.xlane.xlu0 %604
        %606 = vadd.xlane.f32.xlu0 %v601
        %v607 = vpop.xlane.xlu0 %606
        %v608 = vrcp.pop 128.0
        %v609 = vmul.f32 128.0, %v608
        %v610 = vsub.f32 1.0, %v609
        %v611 = vmul.f32 %v608, %v610
        %v612 = vadd.f32 %v608, %v611
        %vm613 = vweird.f32 %v608
        %v614 = vsel %vm613, %v608, %v612
        %v615 = vmul.f32 %v605, %v614
        %v616 = vmul.f32 %v607, %v614
        %v617 = vsub.f32 %v600, %v615
        %v618 = vsub.f32 %v601, %v616
        %v619 = vmul.f32 %v617, %v617
        %v620 = vmul.f32 %v618, %v618
        %621 = vadd.xlane.f32.xlu0 %v619
        %v622 = vpop.xlane.xlu0 %621
        %623 = vadd.xlane.f32.xlu0 %v620
        %v624 = vpop.xlane.xlu0 %623
        %v625 = vmul.f32 %v622, %v614
        %v626 = vmul.f32 %v624, %v614
        %v627 = vadd.f32 %v625, 1e-05
        %v628 = vadd.f32 %v626, 1e-05
        %v629 = vrsqrt.pop %v627
        %v630 = vmul.f32 %v629, %v627
        %v631 = vmul.f32 %v630, %v629
        %v632 = vmul.f32 0.5, %v631
        %v633 = vsub.f32 1.5, %v632
        %v634 = vmul.f32 %v629, %v633
        %vm635 = vweird.f32 %v627
        %vm636 = vweird.f32 %v629
        %vm637 = vmor %vm635, %vm636
        %v638 = vsel %vm637, %v629, %v634
        %v639 = vrsqrt.pop %v628
        %v640 = vmul.f32 %v639, %v628
        %v641 = vmul.f32 %v640, %v639
        %v642 = vmul.f32 0.5, %v641
        %v643 = vsub.f32 1.5, %v642
        %v644 = vmul.f32 %v639, %v643
        %vm645 = vweird.f32 %v628
        %vm646 = vweird.f32 %v639
        %vm647 = vmor %vm645, %vm646
        %v648 = vsel %vm647, %v639, %v644
        %v649 = vmul.f32 %v617, %v638
        %v650 = vmul.f32 %v618, %v648
        %v652 = vperm.slane %v602, 0
        %v654 = vmul.f32 %v649, %v652
        %v655 = vmul.f32 %v650, %v652
        %v657 = vperm.slane %v603, 0
        %v659 = vadd.f32 %v654, %v657
        %v660 = vadd.f32 %v655, %v657
        %v661 = vld [vmem:[#allocation8] sm:$0xff]
        %v662 = vld [vmem:[#allocation8 + $0x8] sm:$0xff]
        %v663 = vld [vmem:[#allocation8 + $0x10] sm:$0xff]
        %v664 = vld [vmem:[#allocation8 + $0x18] sm:$0xff]
        %v665 = vld [vmem:[#allocation8 + $0x20] sm:$0xff]
        %v666 = vld [vmem:[#allocation8 + $0x28] sm:$0xff]
        %v667 = vld [vmem:[#allocation8 + $0x30] sm:$0xff]
        %v668 = vld [vmem:[#allocation8 + $0x38] sm:$0xff]
        %v669 = vld [vmem:[#allocation8 + $0x40] sm:$0xff]
        %v670 = vld [vmem:[#allocation8 + $0x48] sm:$0xff]
        %v671 = vld [vmem:[#allocation8 + $0x50] sm:$0xff]
        %v672 = vld [vmem:[#allocation8 + $0x58] sm:$0xff]
        %v673 = vld [vmem:[#allocation8 + $0x60] sm:$0xff]
        %v674 = vld [vmem:[#allocation8 + $0x68] sm:$0xff]
        %v675 = vld [vmem:[#allocation8 + $0x70] sm:$0xff]
        %v676 = vld [vmem:[#allocation8 + $0x78] sm:$0xff]
        %v677 = vld [vmem:[#allocation8 + $0x80] sm:$0xff]
        %v678 = vld [vmem:[#allocation8 + $0x88] sm:$0xff]
        %v679 = vld [vmem:[#allocation8 + $0x90] sm:$0xff]
        %v680 = vld [vmem:[#allocation8 + $0x98] sm:$0xff]
        %v681 = vld [vmem:[#allocation8 + $0xa0] sm:$0xff]
        %v682 = vld [vmem:[#allocation8 + $0xa8] sm:$0xff]
        %v683 = vld [vmem:[#allocation8 + $0xb0] sm:$0xff]
        %v684 = vld [vmem:[#allocation8 + $0xb8] sm:$0xff]
        %v685 = vld [vmem:[#allocation8 + $0xc0] sm:$0xff]
        %v686 = vld [vmem:[#allocation8 + $0xc8] sm:$0xff]
        %v687 = vld [vmem:[#allocation8 + $0xd0] sm:$0xff]
        %v688 = vld [vmem:[#allocation8 + $0xd8] sm:$0xff]
        %v689 = vld [vmem:[#allocation8 + $0xe0] sm:$0xff]
        %v690 = vld [vmem:[#allocation8 + $0xe8] sm:$0xff]
        %v691 = vld [vmem:[#allocation8 + $0xf0] sm:$0xff]
        %v692 = vld [vmem:[#allocation8 + $0xf8] sm:$0xff]
        %v693 = vld [vmem:[#allocation8 + $0x100] sm:$0xff]
        %v694 = vld [vmem:[#allocation8 + $0x108] sm:$0xff]
        %v695 = vld [vmem:[#allocation8 + $0x110] sm:$0xff]
        %v696 = vld [vmem:[#allocation8 + $0x118] sm:$0xff]
        %v697 = vld [vmem:[#allocation8 + $0x120] sm:$0xff]
        %v698 = vld [vmem:[#allocation8 + $0x128] sm:$0xff]
        %v699 = vld [vmem:[#allocation8 + $0x130] sm:$0xff]
        %v700 = vld [vmem:[#allocation8 + $0x138] sm:$0xff]
        %v701 = vld [vmem:[#allocation8 + $0x140] sm:$0xff]
        %v702 = vld [vmem:[#allocation8 + $0x148] sm:$0xff]
        %v703 = vld [vmem:[#allocation8 + $0x150] sm:$0xff]
        %v704 = vld [vmem:[#allocation8 + $0x158] sm:$0xff]
        %v705 = vld [vmem:[#allocation8 + $0x160] sm:$0xff]
        %v706 = vld [vmem:[#allocation8 + $0x168] sm:$0xff]
        %v707 = vld [vmem:[#allocation8 + $0x170] sm:$0xff]
        %v708 = vld [vmem:[#allocation8 + $0x178] sm:$0xff]
        %v709 = vld [vmem:[%s4] sm:$0x7]
        %v711 = vperm.slane %v709, 0
        %v712 = vperm.slane %v709, 1
        %v713 = vperm.slane %v709, 2
        %717 = vmatpush.msra.mxu0 %v706
        %718 = vmatpush.msra.mxu0 %v703
        %719 = vmatpush.msra.mxu0 %v700
        %720 = vmatpush.msra.mxu0 %v697
        %721 = vmatpush.msra.mxu0 %v694
        %722 = vmatpush.msra.mxu0 %v691
        %723 = vmatpush.msra.mxu0 %v688
        %724 = vmatpush.msra.mxu0 %v685
        %725 = vmatpush.msra.mxu0 %v682
        %726 = vmatpush.msra.mxu0 %v679
        %727 = vmatpush.msra.mxu0 %v676
        %728 = vmatpush.msra.mxu0 %v673
        %729 = vmatpush.msra.mxu0 %v670
        %730 = vmatpush.msra.mxu0 %v667
        %731 = vmatpush.msra.mxu0 %v664
        %732 = vmatpush.msra.mxu0 %v661
        %733 = vmatmul.f32.gmra.mxu0 %v659
        %v734 = vpop.f32.mrf.mxu0
        %v735 = vadd.f32 %v711, %v734
        %736 = vmatmul.f32.gmra.mxu0 %v660
        %v737 = vpop.f32.mrf.mxu0
        %v738 = vadd.f32 %v711, %v737
        %739 = vdwg.mxu0
        %740 = vmatpush.msra.mxu0 %v707
        %741 = vmatpush.msra.mxu0 %v704
        %742 = vmatpush.msra.mxu0 %v701
        %743 = vmatpush.msra.mxu0 %v698
        %744 = vmatpush.msra.mxu0 %v695
        %745 = vmatpush.msra.mxu0 %v692
        %746 = vmatpush.msra.mxu0 %v689
        %747 = vmatpush.msra.mxu0 %v686
        %748 = vmatpush.msra.mxu0 %v683
        %749 = vmatpush.msra.mxu0 %v680
        %750 = vmatpush.msra.mxu0 %v677
        %751 = vmatpush.msra.mxu0 %v674
        %752 = vmatpush.msra.mxu0 %v671
        %753 = vmatpush.msra.mxu0 %v668
        %754 = vmatpush.msra.mxu0 %v665
        %755 = vmatpush.msra.mxu0 %v662
        %756 = vmatmul.f32.gmra.mxu0 %v659
        %v757 = vpop.f32.mrf.mxu0
        %v758 = vadd.f32 %v712, %v757
        %759 = vmatmul.f32.gmra.mxu0 %v660
        %v760 = vpop.f32.mrf.mxu0
        %v761 = vadd.f32 %v712, %v760
        %762 = vdwg.mxu0
        %763 = vmatpush.msra.mxu0 %v708
        %764 = vmatpush.msra.mxu0 %v705
        %765 = vmatpush.msra.mxu0 %v702
        %766 = vmatpush.msra.mxu0 %v699
        %767 = vmatpush.msra.mxu0 %v696
        %768 = vmatpush.msra.mxu0 %v693
        %769 = vmatpush.msra.mxu0 %v690
        %770 = vmatpush.msra.mxu0 %v687
        %771 = vmatpush.msra.mxu0 %v684
        %772 = vmatpush.msra.mxu0 %v681
        %773 = vmatpush.msra.mxu0 %v678
        %774 = vmatpush.msra.mxu0 %v675
        %775 = vmatpush.msra.mxu0 %v672
        %776 = vmatpush.msra.mxu0 %v669
        %777 = vmatpush.msra.mxu0 %v666
        %778 = vmatpush.msra.mxu0 %v663
        %779 = vmatmul.f32.gmra.mxu0 %v659
        %v780 = vpop.f32.mrf.mxu0
        %v781 = vadd.f32 %v713, %v780
        %782 = vmatmul.f32.gmra.mxu0 %v660
        %v783 = vpop.f32.mrf.mxu0
        %v784 = vadd.f32 %v713, %v783
        %785 = vdwg.mxu0
        %v786 = vmul.f32 %v735, 0.17677669
        %v787 = vmul.f32 %v738, 0.17677669
        %790 = vrot.lane.b32.xlu0 %v786, 96
        %v791 = vpop.permute.xlu0 %790
        %792 = vrot.lane.b32.xlu0 %v787, 96
        %v793 = vpop.permute.xlu0 %792
        %794 = vrot.lane.b32.xlu0 %v786, 64
        %v795 = vpop.permute.xlu0 %794
        %796 = vrot.lane.b32.xlu0 %v787, 64
        %v797 = vpop.permute.xlu0 %796
        %798 = vrot.lane.b32.xlu0 %v786, 32
        %v799 = vpop.permute.xlu0 %798
        %800 = vrot.lane.b32.xlu0 %v787, 32
        %v801 = vpop.permute.xlu0 %800
        %804 = vrot.lane.b32.xlu0 %v758, 96
        %v805 = vpop.permute.xlu0 %804
        %806 = vrot.lane.b32.xlu0 %v761, 96
        %v807 = vpop.permute.xlu0 %806
        %808 = vrot.lane.b32.xlu0 %v758, 64
        %v809 = vpop.permute.xlu0 %808
        %810 = vrot.lane.b32.xlu0 %v761, 64
        %v811 = vpop.permute.xlu0 %810
        %812 = vrot.lane.b32.xlu0 %v758, 32
        %v813 = vpop.permute.xlu0 %812
        %814 = vrot.lane.b32.xlu0 %v761, 32
        %v815 = vpop.permute.xlu0 %814
        %818 = vrot.lane.b32.xlu0 %v781, 96
        %v819 = vpop.permute.xlu0 %818
        %820 = vrot.lane.b32.xlu0 %v784, 96
        %v821 = vpop.permute.xlu0 %820
        %824 = vrot.lane.b32.xlu0 %v781, 64
        %v825 = vpop.permute.xlu0 %824
        %826 = vrot.lane.b32.xlu0 %v784, 64
        %v827 = vpop.permute.xlu0 %826
        %830 = vrot.lane.b32.xlu0 %v781, 32
        %v831 = vpop.permute.xlu0 %830
        %832 = vrot.lane.b32.xlu0 %v784, 32
        %v833 = vpop.permute.xlu0 %832
        %vm836 = vcmask 261120
        %v837 = vsel %vm836, %v786, 0
        %v839 = vsel %vm836, %v787, 0
        %v841 = vsel %vm836, %v758, 0
        %v843 = vsel %vm836, %v761, 0
        %845 = vmatpush.xpose.msra.mxu0 0.0
        %846 = vmatpush.xpose.msra.mxu0 0.0
        %847 = vmatpush.xpose.msra.mxu0 0.0
        %848 = vmatpush.xpose.msra.mxu0 0.0
        %849 = vmatpush.xpose.msra.mxu0 0.0
        %850 = vmatpush.xpose.msra.mxu0 0.0
        %851 = vmatpush.xpose.msra.mxu0 0.0
        %852 = vmatpush.xpose.msra.mxu0 0.0
        %853 = vmatpush.xpose.msra.mxu0 0.0
        %854 = vmatpush.xpose.msra.mxu0 0.0
        %855 = vmatpush.xpose.msra.mxu0 0.0
        %856 = vmatpush.xpose.msra.mxu0 0.0
        %857 = vmatpush.xpose.msra.mxu0 0.0
        %858 = vmatpush.xpose.msra.mxu0 0.0
        %859 = vmatpush.xpose.msra.mxu0 %v843
        %860 = vmatpush.xpose.msra.mxu0 %v841
        %861 = vmatmul.f32.gmra.mxu0 %v837
        %v862 = vpop.f32.mrf.mxu0
        %v863 = vadd.f32 0.0, %v862
        %864 = vmatmul.f32.gmra.mxu0 %v839
        %v865 = vpop.f32.mrf.mxu0
        %v866 = vadd.f32 0.0, %v865
        %867 = vdwg.mxu0
        %v868 = vsel %vm836, %v791, 0
        %v870 = vsel %vm836, %v793, 0
        %v872 = vsel %vm836, %v805, 0
        %v874 = vsel %vm836, %v807, 0
        %876 = vmatpush.xpose.msra.mxu0 0.0
        %877 = vmatpush.xpose.msra.mxu0 0.0
        %878 = vmatpush.xpose.msra.mxu0 0.0
        %879 = vmatpush.xpose.msra.mxu0 0.0
        %880 = vmatpush.xpose.msra.mxu0 0.0
        %881 = vmatpush.xpose.msra.mxu0 0.0
        %882 = vmatpush.xpose.msra.mxu0 0.0
        %883 = vmatpush.xpose.msra.mxu0 0.0
        %884 = vmatpush.xpose.msra.mxu0 0.0
        %885 = vmatpush.xpose.msra.mxu0 0.0
        %886 = vmatpush.xpose.msra.mxu0 0.0
        %887 = vmatpush.xpose.msra.mxu0 0.0
        %888 = vmatpush.xpose.msra.mxu0 0.0
        %889 = vmatpush.xpose.msra.mxu0 0.0
        %890 = vmatpush.xpose.msra.mxu0 %v874
        %891 = vmatpush.xpose.msra.mxu0 %v872
        %892 = vmatmul.f32.gmra.mxu0 %v868
        %v893 = vpop.f32.mrf.mxu0
        %v894 = vadd.f32 0.0, %v893
        %895 = vmatmul.f32.gmra.mxu0 %v870
        %v896 = vpop.f32.mrf.mxu0
        %v897 = vadd.f32 0.0, %v896
        %898 = vdwg.mxu0
        %v899 = vsel %vm836, %v795, 0
        %v901 = vsel %vm836, %v797, 0
        %v903 = vsel %vm836, %v809, 0
        %v905 = vsel %vm836, %v811, 0
        %907 = vmatpush.xpose.msra.mxu0 0.0
        %908 = vmatpush.xpose.msra.mxu0 0.0
        %909 = vmatpush.xpose.msra.mxu0 0.0
        %910 = vmatpush.xpose.msra.mxu0 0.0
        %911 = vmatpush.xpose.msra.mxu0 0.0
        %912 = vmatpush.xpose.msra.mxu0 0.0
        %913 = vmatpush.xpose.msra.mxu0 0.0
        %914 = vmatpush.xpose.msra.mxu0 0.0
        %915 = vmatpush.xpose.msra.mxu0 0.0
        %916 = vmatpush.xpose.msra.mxu0 0.0
        %917 = vmatpush.xpose.msra.mxu0 0.0
        %918 = vmatpush.xpose.msra.mxu0 0.0
        %919 = vmatpush.xpose.msra.mxu0 0.0
        %920 = vmatpush.xpose.msra.mxu0 0.0
        %921 = vmatpush.xpose.msra.mxu0 %v905
        %922 = vmatpush.xpose.msra.mxu0 %v903
        %923 = vmatmul.f32.gmra.mxu0 %v899
        %v924 = vpop.f32.mrf.mxu0
        %v925 = vadd.f32 0.0, %v924
        %926 = vmatmul.f32.gmra.mxu0 %v901
        %v927 = vpop.f32.mrf.mxu0
        %v928 = vadd.f32 0.0, %v927
        %929 = vdwg.mxu0
        %v930 = vsel %vm836, %v799, 0
        %v932 = vsel %vm836, %v801, 0
        %v934 = vsel %vm836, %v813, 0
        %v936 = vsel %vm836, %v815, 0
        %938 = vmatpush.xpose.msra.mxu0 0.0
        %939 = vmatpush.xpose.msra.mxu0 0.0
        %940 = vmatpush.xpose.msra.mxu0 0.0
        %941 = vmatpush.xpose.msra.mxu0 0.0
        %942 = vmatpush.xpose.msra.mxu0 0.0
        %943 = vmatpush.xpose.msra.mxu0 0.0
        %944 = vmatpush.xpose.msra.mxu0 0.0
        %945 = vmatpush.xpose.msra.mxu0 0.0
        %946 = vmatpush.xpose.msra.mxu0 0.0
        %947 = vmatpush.xpose.msra.mxu0 0.0
        %948 = vmatpush.xpose.msra.mxu0 0.0
        %949 = vmatpush.xpose.msra.mxu0 0.0
        %950 = vmatpush.xpose.msra.mxu0 0.0
        %951 = vmatpush.xpose.msra.mxu0 0.0
        %952 = vmatpush.xpose.msra.mxu0 %v936
        %953 = vmatpush.xpose.msra.mxu0 %v934
        %954 = vmatmul.f32.gmra.mxu0 %v930
        %v955 = vpop.f32.mrf.mxu0
        %v956 = vadd.f32 0.0, %v955
        %957 = vmatmul.f32.gmra.mxu0 %v932
        %v958 = vpop.f32.mrf.mxu0
        %v959 = vadd.f32 0.0, %v958
        %960 = vdwg.mxu0
        %vm961 = vcmask 130048
        %v962 = vsel %vm961, %v863, -inf
        %963 = vmax.xlane.f32.xlu0 %v962
        %v964 = vpop.xlane.xlu0 %963
        %v965 = vsel %vm961, %v866, -inf
        %966 = vmax.xlane.f32.xlu0 %v965
        %v967 = vpop.xlane.xlu0 %966
        %v968 = vsel %vm961, %v894, -inf
        %969 = vmax.xlane.f32.xlu0 %v968
        %v970 = vpop.xlane.xlu0 %969
        %v971 = vsel %vm961, %v897, -inf
        %972 = vmax.xlane.f32.xlu0 %v971
        %v973 = vpop.xlane.xlu0 %972
        %v974 = vsel %vm961, %v925, -inf
        %975 = vmax.xlane.f32.xlu0 %v974
        %v976 = vpop.xlane.xlu0 %975
        %v977 = vsel %vm961, %v928, -inf
        %978 = vmax.xlane.f32.xlu0 %v977
        %v979 = vpop.xlane.xlu0 %978
        %v980 = vsel %vm961, %v956, -inf
        %981 = vmax.xlane.f32.xlu0 %v980
        %v982 = vpop.xlane.xlu0 %981
        %v983 = vsel %vm961, %v959, -inf
        %984 = vmax.xlane.f32.xlu0 %v983
        %v985 = vpop.xlane.xlu0 %984
        %v986 = vsub.f32 %v863, %v964
        %v987 = vsub.f32 %v866, %v967
        %v988 = vsub.f32 %v894, %v970
        %v989 = vsub.f32 %v897, %v973
        %v990 = vsub.f32 %v925, %v976
        %v991 = vsub.f32 %v928, %v979
        %v992 = vsub.f32 %v956, %v982
        %v993 = vsub.f32 %v959, %v985
        %v994 = vmul.f32 %v986, 1.442695
        %v995 = vpow.pop %v994
        %v996 = vmul.f32 %v987, 1.442695
        %v997 = vpow.pop %v996
        %v998 = vmul.f32 %v988, 1.442695
        %v999 = vpow.pop %v998
        %v1000 = vmul.f32 %v989, 1.442695
        %v1001 = vpow.pop %v1000
        %v1002 = vmul.f32 %v990, 1.442695
        %v1003 = vpow.pop %v1002
        %v1004 = vmul.f32 %v991, 1.442695
        %v1005 = vpow.pop %v1004
        %v1006 = vmul.f32 %v992, 1.442695
        %v1007 = vpow.pop %v1006
        %v1008 = vmul.f32 %v993, 1.442695
        %v1009 = vpow.pop %v1008
        %v1010 = vsel %vm961, %v995, 0.0
        %1011 = vadd.xlane.f32.xlu0 %v1010
        %v1012 = vpop.xlane.xlu0 %1011
        %v1013 = vsel %vm961, %v997, 0.0
        %1014 = vadd.xlane.f32.xlu0 %v1013
        %v1015 = vpop.xlane.xlu0 %1014
        %v1016 = vsel %vm961, %v999, 0.0
        %1017 = vadd.xlane.f32.xlu0 %v1016
        %v1018 = vpop.xlane.xlu0 %1017
        %v1019 = vsel %vm961, %v1001, 0.0
        %1020 = vadd.xlane.f32.xlu0 %v1019
        %v1021 = vpop.xlane.xlu0 %1020
        %v1022 = vsel %vm961, %v1003, 0.0
        %1023 = vadd.xlane.f32.xlu0 %v1022
        %v1024 = vpop.xlane.xlu0 %1023
        %v1025 = vsel %vm961, %v1005, 0.0
        %1026 = vadd.xlane.f32.xlu0 %v1025
        %v1027 = vpop.xlane.xlu0 %1026
        %v1028 = vsel %vm961, %v1007, 0.0
        %1029 = vadd.xlane.f32.xlu0 %v1028
        %v1030 = vpop.xlane.xlu0 %1029
        %v1031 = vsel %vm961, %v1009, 0.0
        %1032 = vadd.xlane.f32.xlu0 %v1031
        %v1033 = vpop.xlane.xlu0 %1032
        %v1034 = vrcp.pop %v1012
        %v1035 = vrcp.pop %v1015
        %v1036 = vrcp.pop %v1018
        %v1037 = vrcp.pop %v1021
        %v1038 = vrcp.pop %v1024
        %v1039 = vrcp.pop %v1027
        %v1040 = vrcp.pop %v1030
        %v1041 = vrcp.pop %v1033
        %v1042 = vmul.f32 %v995, %v1034
        %v1043 = vmul.f32 %v997, %v1035
        %v1044 = vmul.f32 %v999, %v1036
        %v1045 = vmul.f32 %v1001, %v1037
        %v1046 = vmul.f32 %v1003, %v1038
        %v1047 = vmul.f32 %v1005, %v1039
        %v1048 = vmul.f32 %v1007, %v1040
        %v1049 = vmul.f32 %v1009, %v1041
        %v1051 = vsel %vm961, %v1042, 0
        %v1054 = vsel %vm961, %v1043, 0
        %1056 = vmatpush.msra.mxu0 0.0
        %1057 = vmatpush.msra.mxu0 0.0
        %1058 = vmatpush.msra.mxu0 0.0
        %1059 = vmatpush.msra.mxu0 0.0
        %1060 = vmatpush.msra.mxu0 0.0
        %1061 = vmatpush.msra.mxu0 0.0
        %1062 = vmatpush.msra.mxu0 0.0
        %1063 = vmatpush.msra.mxu0 0.0
        %1064 = vmatpush.msra.mxu0 0.0
        %1065 = vmatpush.msra.mxu0 0.0
        %1066 = vmatpush.msra.mxu0 0.0
        %1067 = vmatpush.msra.mxu0 0.0
        %1068 = vmatpush.msra.mxu0 0.0
        %1069 = vmatpush.msra.mxu0 0.0
        %1070 = vmatpush.msra.mxu0 %v784
        %1071 = vmatpush.msra.mxu0 %v781
        %1072 = vmatmul.f32.gmra.mxu0 %v1051
        %v1073 = vpop.f32.mrf.mxu0
        %v1074 = vadd.f32 0.0, %v1073
        %1075 = vmatmul.f32.gmra.mxu0 %v1054
        %v1076 = vpop.f32.mrf.mxu0
        %v1077 = vadd.f32 0.0, %v1076
        %1078 = vdwg.mxu0
        %v1080 = vsel %vm961, %v1044, 0
        %v1083 = vsel %vm961, %v1045, 0
        %1085 = vmatpush.msra.mxu0 0.0
        %1086 = vmatpush.msra.mxu0 0.0
        %1087 = vmatpush.msra.mxu0 0.0
        %1088 = vmatpush.msra.mxu0 0.0
        %1089 = vmatpush.msra.mxu0 0.0
        %1090 = vmatpush.msra.mxu0 0.0
        %1091 = vmatpush.msra.mxu0 0.0
        %1092 = vmatpush.msra.mxu0 0.0
        %1093 = vmatpush.msra.mxu0 0.0
        %1094 = vmatpush.msra.mxu0 0.0
        %1095 = vmatpush.msra.mxu0 0.0
        %1096 = vmatpush.msra.mxu0 0.0
        %1097 = vmatpush.msra.mxu0 0.0
        %1098 = vmatpush.msra.mxu0 0.0
        %1099 = vmatpush.msra.mxu0 %v821
        %1100 = vmatpush.msra.mxu0 %v819
        %1101 = vmatmul.f32.gmra.mxu0 %v1080
        %v1102 = vpop.f32.mrf.mxu0
        %v1103 = vadd.f32 0.0, %v1102
        %1104 = vmatmul.f32.gmra.mxu0 %v1083
        %v1105 = vpop.f32.mrf.mxu0
        %v1106 = vadd.f32 0.0, %v1105
        %1107 = vdwg.mxu0
        %v1109 = vsel %vm961, %v1046, 0
        %v1112 = vsel %vm961, %v1047, 0
        %1114 = vmatpush.msra.mxu0 0.0
        %1115 = vmatpush.msra.mxu0 0.0
        %1116 = vmatpush.msra.mxu0 0.0
        %1117 = vmatpush.msra.mxu0 0.0
        %1118 = vmatpush.msra.mxu0 0.0
        %1119 = vmatpush.msra.mxu0 0.0
        %1120 = vmatpush.msra.mxu0 0.0
        %1121 = vmatpush.msra.mxu0 0.0
        %1122 = vmatpush.msra.mxu0 0.0
        %1123 = vmatpush.msra.mxu0 0.0
        %1124 = vmatpush.msra.mxu0 0.0
        %1125 = vmatpush.msra.mxu0 0.0
        %1126 = vmatpush.msra.mxu0 0.0
        %1127 = vmatpush.msra.mxu0 0.0
        %1128 = vmatpush.msra.mxu0 %v827
        %1129 = vmatpush.msra.mxu0 %v825
        %1130 = vmatmul.f32.gmra.mxu0 %v1109
        %v1131 = vpop.f32.mrf.mxu0
        %v1132 = vadd.f32 0.0, %v1131
        %1133 = vmatmul.f32.gmra.mxu0 %v1112
        %v1134 = vpop.f32.mrf.mxu0
        %v1135 = vadd.f32 0.0, %v1134
        %1136 = vdwg.mxu0
        %v1138 = vsel %vm961, %v1048, 0
        %v1141 = vsel %vm961, %v1049, 0
        %1143 = vmatpush.msra.mxu0 0.0
        %1144 = vmatpush.msra.mxu0 0.0
        %1145 = vmatpush.msra.mxu0 0.0
        %1146 = vmatpush.msra.mxu0 0.0
        %1147 = vmatpush.msra.mxu0 0.0
        %1148 = vmatpush.msra.mxu0 0.0
        %1149 = vmatpush.msra.mxu0 0.0
        %1150 = vmatpush.msra.mxu0 0.0
        %1151 = vmatpush.msra.mxu0 0.0
        %1152 = vmatpush.msra.mxu0 0.0
        %1153 = vmatpush.msra.mxu0 0.0
        %1154 = vmatpush.msra.mxu0 0.0
        %1155 = vmatpush.msra.mxu0 0.0
        %1156 = vmatpush.msra.mxu0 0.0
        %1157 = vmatpush.msra.mxu0 %v833
        %1158 = vmatpush.msra.mxu0 %v831
        %1159 = vmatmul.f32.gmra.mxu0 %v1138
        %v1160 = vpop.f32.mrf.mxu0
        %v1161 = vadd.f32 0.0, %v1160
        %1162 = vmatmul.f32.gmra.mxu0 %v1141
        %v1163 = vpop.f32.mrf.mxu0
        %v1164 = vadd.f32 0.0, %v1163
        %1165 = vdwg.mxu0
        %1168 = vrot.lane.b32.xlu0 %v1103, 32
        %v1169 = vpop.permute.xlu0 %1168
        %1170 = vrot.lane.b32.xlu0 %v1106, 32
        %v1171 = vpop.permute.xlu0 %1170
        %1176 = vrot.lane.b32.xlu0 %v1132, 64
        %v1177 = vpop.permute.xlu0 %1176
        %1178 = vrot.lane.b32.xlu0 %v1135, 64
        %v1179 = vpop.permute.xlu0 %1178
        %1184 = vrot.lane.b32.xlu0 %v1161, 96
        %v1185 = vpop.permute.xlu0 %1184
        %1186 = vrot.lane.b32.xlu0 %v1164, 96
        %v1187 = vpop.permute.xlu0 %1186
        %v1190 = vsel %vm836, %v1074, %v1169
        %v1191 = vsel %vm836, %v1077, %v1171
        %vm1192 = vcmask 523264
        %v1193 = vsel %vm1192, %v1190, %v1177
        %v1194 = vsel %vm1192, %v1191, %v1179
        %vm1195 = vcmask 785408
        %v1196 = vsel %vm1195, %v1193, %v1185
        %v1197 = vsel %vm1195, %v1194, %v1187
        %v1198 = vld [vmem:[#allocation10] sm:$0xff]
        %v1199 = vld [vmem:[#allocation10 + $0x8] sm:$0xff]
        %v1200 = vld [vmem:[#allocation10 + $0x10] sm:$0xff]
        %v1201 = vld [vmem:[#allocation10 + $0x18] sm:$0xff]
        %v1202 = vld [vmem:[#allocation10 + $0x20] sm:$0xff]
        %v1203 = vld [vmem:[#allocation10 + $0x28] sm:$0xff]
        %v1204 = vld [vmem:[#allocation10 + $0x30] sm:$0xff]
        %v1205 = vld [vmem:[#allocation10 + $0x38] sm:$0xff]
        %v1206 = vld [vmem:[#allocation10 + $0x40] sm:$0xff]
        %v1207 = vld [vmem:[#allocation10 + $0x48] sm:$0xff]
        %v1208 = vld [vmem:[#allocation10 + $0x50] sm:$0xff]
        %v1209 = vld [vmem:[#allocation10 + $0x58] sm:$0xff]
        %v1210 = vld [vmem:[#allocation10 + $0x60] sm:$0xff]
        %v1211 = vld [vmem:[#allocation10 + $0x68] sm:$0xff]
        %v1212 = vld [vmem:[#allocation10 + $0x70] sm:$0xff]
        %v1213 = vld [vmem:[#allocation10 + $0x78] sm:$0xff]
        %v1214 = vld [vmem:[#allocation11] sm:$0x1]
        %v1216 = vperm.slane %v1214, 0
        %1218 = vmatpush.msra.mxu0 %v1213
        %1219 = vmatpush.msra.mxu0 %v1212
        %1220 = vmatpush.msra.mxu0 %v1211
        %1221 = vmatpush.msra.mxu0 %v1210
        %1222 = vmatpush.msra.mxu0 %v1209
        %1223 = vmatpush.msra.mxu0 %v1208
        %1224 = vmatpush.msra.mxu0 %v1207
        %1225 = vmatpush.msra.mxu0 %v1206
        %1226 = vmatpush.msra.mxu0 %v1205
        %1227 = vmatpush.msra.mxu0 %v1204
        %1228 = vmatpush.msra.mxu0 %v1203
        %1229 = vmatpush.msra.mxu0 %v1202
        %1230 = vmatpush.msra.mxu0 %v1201
        %1231 = vmatpush.msra.mxu0 %v1200
        %1232 = vmatpush.msra.mxu0 %v1199
        %1233 = vmatpush.msra.mxu0 %v1198
        %1234 = vmatmul.f32.gmra.mxu0 %v1196
        %v1235 = vpop.f32.mrf.mxu0
        %v1236 = vadd.f32 %v1216, %v1235
        %1237 = vmatmul.f32.gmra.mxu0 %v1197
        %v1238 = vpop.f32.mrf.mxu0
        %v1239 = vadd.f32 %v1216, %v1238
        %1240 = vdwg.mxu0
        %v1241 = vadd.f32 %v600, %v1236
        %v1242 = vadd.f32 %v601, %v1239
        %v1243 = vld [vmem:[#allocation13] sm:$0x1]
        %v1244 = vld [vmem:[#allocation14] sm:$0x1]
        %1245 = vadd.xlane.f32.xlu0 %v1241
        %v1246 = vpop.xlane.xlu0 %1245
        %1247 = vadd.xlane.f32.xlu0 %v1242
        %v1248 = vpop.xlane.xlu0 %1247
        %v1249 = vmul.f32 %v1246, %v614
        %v1250 = vmul.f32 %v1248, %v614
        %v1251 = vsub.f32 %v1241, %v1249
        %v1252 = vsub.f32 %v1242, %v1250
        %v1253 = vmul.f32 %v1251, %v1251
        %v1254 = vmul.f32 %v1252, %v1252
        %1255 = vadd.xlane.f32.xlu0 %v1253
        %v1256 = vpop.xlane.xlu0 %1255
        %1257 = vadd.xlane.f32.xlu0 %v1254
        %v1258 = vpop.xlane.xlu0 %1257
        %v1259 = vmul.f32 %v1256, %v614
        %v1260 = vmul.f32 %v1258, %v614
        %v1261 = vadd.f32 %v1259, 1e-05
        %v1262 = vadd.f32 %v1260, 1e-05
        %v1263 = vrsqrt.pop %v1261
        %v1264 = vmul.f32 %v1263, %v1261
        %v1265 = vmul.f32 %v1264, %v1263
        %v1266 = vmul.f32 0.5, %v1265
        %v1267 = vsub.f32 1.5, %v1266
        %v1268 = vmul.f32 %v1263, %v1267
        %vm1269 = vweird.f32 %v1261
        %vm1270 = vweird.f32 %v1263
        %vm1271 = vmor %vm1269, %vm1270
        %v1272 = vsel %vm1271, %v1263, %v1268
        %v1273 = vrsqrt.pop %v1262
        %v1274 = vmul.f32 %v1273, %v1262
        %v1275 = vmul.f32 %v1274, %v1273
        %v1276 = vmul.f32 0.5, %v1275
        %v1277 = vsub.f32 1.5, %v1276
        %v1278 = vmul.f32 %v1273, %v1277
        %vm1279 = vweird.f32 %v1262
        %vm1280 = vweird.f32 %v1273
        %vm1281 = vmor %vm1279, %vm1280
        %v1282 = vsel %vm1281, %v1273, %v1278
        %v1283 = vmul.f32 %v1251, %v1272
        %v1284 = vmul.f32 %v1252, %v1282
        %v1286 = vperm.slane %v1243, 0
        %v1288 = vmul.f32 %v1283, %v1286
        %v1289 = vmul.f32 %v1284, %v1286
        %v1291 = vperm.slane %v1244, 0
        %v1293 = vadd.f32 %v1288, %v1291
        %v1294 = vadd.f32 %v1289, %v1291
        %v1295 = vld [vmem:[#allocation16] sm:$0xff]
        %v1296 = vld [vmem:[#allocation16 + $0x8] sm:$0xff]
        %v1297 = vld [vmem:[#allocation16 + $0x10] sm:$0xff]
        %v1298 = vld [vmem:[#allocation16 + $0x18] sm:$0xff]
        %v1299 = vld [vmem:[#allocation16 + $0x20] sm:$0xff]
        %v1300 = vld [vmem:[#allocation16 + $0x28] sm:$0xff]
        %v1301 = vld [vmem:[#allocation16 + $0x30] sm:$0xff]
        %v1302 = vld [vmem:[#allocation16 + $0x38] sm:$0xff]
        %v1303 = vld [vmem:[#allocation16 + $0x40] sm:$0xff]
        %v1304 = vld [vmem:[#allocation16 + $0x48] sm:$0xff]
        %v1305 = vld [vmem:[#allocation16 + $0x50] sm:$0xff]
        %v1306 = vld [vmem:[#allocation16 + $0x58] sm:$0xff]
        %v1307 = vld [vmem:[#allocation16 + $0x60] sm:$0xff]
        %v1308 = vld [vmem:[#allocation16 + $0x68] sm:$0xff]
        %v1309 = vld [vmem:[#allocation16 + $0x70] sm:$0xff]
        %v1310 = vld [vmem:[#allocation16 + $0x78] sm:$0xff]
        %v1311 = vld [vmem:[#allocation16 + $0x80] sm:$0xff]
        %v1312 = vld [vmem:[#allocation16 + $0x88] sm:$0xff]
        %v1313 = vld [vmem:[#allocation16 + $0x90] sm:$0xff]
        %v1314 = vld [vmem:[#allocation16 + $0x98] sm:$0xff]
        %v1315 = vld [vmem:[#allocation16 + $0xa0] sm:$0xff]
        %v1316 = vld [vmem:[#allocation16 + $0xa8] sm:$0xff]
        %v1317 = vld [vmem:[#allocation16 + $0xb0] sm:$0xff]
        %v1318 = vld [vmem:[#allocation16 + $0xb8] sm:$0xff]
        %v1319 = vld [vmem:[#allocation16 + $0xc0] sm:$0xff]
        %v1320 = vld [vmem:[#allocation16 + $0xc8] sm:$0xff]
        %v1321 = vld [vmem:[#allocation16 + $0xd0] sm:$0xff]
        %v1322 = vld [vmem:[#allocation16 + $0xd8] sm:$0xff]
        %v1323 = vld [vmem:[#allocation16 + $0xe0] sm:$0xff]
        %v1324 = vld [vmem:[#allocation16 + $0xe8] sm:$0xff]
        %v1325 = vld [vmem:[#allocation16 + $0xf0] sm:$0xff]
        %v1326 = vld [vmem:[#allocation16 + $0xf8] sm:$0xff]
        %v1327 = vld [vmem:[#allocation16 + $0x100] sm:$0xff]
        %v1328 = vld [vmem:[#allocation16 + $0x108] sm:$0xff]
        %v1329 = vld [vmem:[#allocation16 + $0x110] sm:$0xff]
        %v1330 = vld [vmem:[#allocation16 + $0x118] sm:$0xff]
        %v1331 = vld [vmem:[#allocation16 + $0x120] sm:$0xff]
        %v1332 = vld [vmem:[#allocation16 + $0x128] sm:$0xff]
        %v1333 = vld [vmem:[#allocation16 + $0x130] sm:$0xff]
        %v1334 = vld [vmem:[#allocation16 + $0x138] sm:$0xff]
        %v1335 = vld [vmem:[#allocation16 + $0x140] sm:$0xff]
        %v1336 = vld [vmem:[#allocation16 + $0x148] sm:$0xff]
        %v1337 = vld [vmem:[#allocation16 + $0x150] sm:$0xff]
        %v1338 = vld [vmem:[#allocation16 + $0x158] sm:$0xff]
        %v1339 = vld [vmem:[#allocation16 + $0x160] sm:$0xff]
        %v1340 = vld [vmem:[#allocation16 + $0x168] sm:$0xff]
        %v1341 = vld [vmem:[#allocation16 + $0x170] sm:$0xff]
        %v1342 = vld [vmem:[#allocation16 + $0x178] sm:$0xff]
        %v1343 = vld [vmem:[#allocation16 + $0x180] sm:$0xff]
        %v1344 = vld [vmem:[#allocation16 + $0x188] sm:$0xff]
        %v1345 = vld [vmem:[#allocation16 + $0x190] sm:$0xff]
        %v1346 = vld [vmem:[#allocation16 + $0x198] sm:$0xff]
        %v1347 = vld [vmem:[#allocation16 + $0x1a0] sm:$0xff]
        %v1348 = vld [vmem:[#allocation16 + $0x1a8] sm:$0xff]
        %v1349 = vld [vmem:[#allocation16 + $0x1b0] sm:$0xff]
        %v1350 = vld [vmem:[#allocation16 + $0x1b8] sm:$0xff]
        %v1351 = vld [vmem:[#allocation16 + $0x1c0] sm:$0xff]
        %v1352 = vld [vmem:[#allocation16 + $0x1c8] sm:$0xff]
        %v1353 = vld [vmem:[#allocation16 + $0x1d0] sm:$0xff]
        %v1354 = vld [vmem:[#allocation16 + $0x1d8] sm:$0xff]
        %v1355 = vld [vmem:[#allocation16 + $0x1e0] sm:$0xff]
        %v1356 = vld [vmem:[#allocation16 + $0x1e8] sm:$0xff]
        %v1357 = vld [vmem:[#allocation16 + $0x1f0] sm:$0xff]
        %v1358 = vld [vmem:[#allocation16 + $0x1f8] sm:$0xff]
        %v1359 = vld [vmem:[%s10] sm:$0xf]
        %v1361 = vperm.slane %v1359, 0
        %v1362 = vperm.slane %v1359, 1
        %v1363 = vperm.slane %v1359, 2
        %v1364 = vperm.slane %v1359, 3
        %1369 = vmatpush.msra.mxu0 %v1355
        %1370 = vmatpush.msra.mxu0 %v1351
        %1371 = vmatpush.msra.mxu0 %v1347
        %1372 = vmatpush.msra.mxu0 %v1343
        %1373 = vmatpush.msra.mxu0 %v1339
        %1374 = vmatpush.msra.mxu0 %v1335
        %1375 = vmatpush.msra.mxu0 %v1331
        %1376 = vmatpush.msra.mxu0 %v1327
        %1377 = vmatpush.msra.mxu0 %v1323
        %1378 = vmatpush.msra.mxu0 %v1319
        %1379 = vmatpush.msra.mxu0 %v1315
        %1380 = vmatpush.msra.mxu0 %v1311
        %1381 = vmatpush.msra.mxu0 %v1307
        %1382 = vmatpush.msra.mxu0 %v1303
        %1383 = vmatpush.msra.mxu0 %v1299
        %1384 = vmatpush.msra.mxu0 %v1295
        %1385 = vmatmul.f32.gmra.mxu0 %v1293
        %v1386 = vpop.f32.mrf.mxu0
        %v1387 = vadd.f32 %v1361, %v1386
        %1388 = vmatmul.f32.gmra.mxu0 %v1294
        %v1389 = vpop.f32.mrf.mxu0
        %v1390 = vadd.f32 %v1361, %v1389
        %1391 = vdwg.mxu0
        %1392 = vmatpush.msra.mxu0 %v1356
        %1393 = vmatpush.msra.mxu0 %v1352
        %1394 = vmatpush.msra.mxu0 %v1348
        %1395 = vmatpush.msra.mxu0 %v1344
        %1396 = vmatpush.msra.mxu0 %v1340
        %1397 = vmatpush.msra.mxu0 %v1336
        %1398 = vmatpush.msra.mxu0 %v1332
        %1399 = vmatpush.msra.mxu0 %v1328
        %1400 = vmatpush.msra.mxu0 %v1324
        %1401 = vmatpush.msra.mxu0 %v1320
        %1402 = vmatpush.msra.mxu0 %v1316
        %1403 = vmatpush.msra.mxu0 %v1312
        %1404 = vmatpush.msra.mxu0 %v1308
        %1405 = vmatpush.msra.mxu0 %v1304
        %1406 = vmatpush.msra.mxu0 %v1300
        %1407 = vmatpush.msra.mxu0 %v1296
        %1408 = vmatmul.f32.gmra.mxu0 %v1293
        %v1409 = vpop.f32.mrf.mxu0
        %v1410 = vadd.f32 %v1362, %v1409
        %1411 = vmatmul.f32.gmra.mxu0 %v1294
        %v1412 = vpop.f32.mrf.mxu0
        %v1413 = vadd.f32 %v1362, %v1412
        %1414 = vdwg.mxu0
        %1415 = vmatpush.msra.mxu0 %v1357
        %1416 = vmatpush.msra.mxu0 %v1353
        %1417 = vmatpush.msra.mxu0 %v1349
        %1418 = vmatpush.msra.mxu0 %v1345
        %1419 = vmatpush.msra.mxu0 %v1341
        %1420 = vmatpush.msra.mxu0 %v1337
        %1421 = vmatpush.msra.mxu0 %v1333
        %1422 = vmatpush.msra.mxu0 %v1329
        %1423 = vmatpush.msra.mxu0 %v1325
        %1424 = vmatpush.msra.mxu0 %v1321
        %1425 = vmatpush.msra.mxu0 %v1317
        %1426 = vmatpush.msra.mxu0 %v1313
        %1427 = vmatpush.msra.mxu0 %v1309
        %1428 = vmatpush.msra.mxu0 %v1305
        %1429 = vmatpush.msra.mxu0 %v1301
        %1430 = vmatpush.msra.mxu0 %v1297
        %1431 = vmatmul.f32.gmra.mxu0 %v1293
        %v1432 = vpop.f32.mrf.mxu0
        %v1433 = vadd.f32 %v1363, %v1432
        %1434 = vmatmul.f32.gmra.mxu0 %v1294
        %v1435 = vpop.f32.mrf.mxu0
        %v1436 = vadd.f32 %v1363, %v1435
        %1437 = vdwg.mxu0
        %1438 = vmatpush.msra.mxu0 %v1358
        %1439 = vmatpush.msra.mxu0 %v1354
        %1440 = vmatpush.msra.mxu0 %v1350
        %1441 = vmatpush.msra.mxu0 %v1346
        %1442 = vmatpush.msra.mxu0 %v1342
        %1443 = vmatpush.msra.mxu0 %v1338
        %1444 = vmatpush.msra.mxu0 %v1334
        %1445 = vmatpush.msra.mxu0 %v1330
        %1446 = vmatpush.msra.mxu0 %v1326
        %1447 = vmatpush.msra.mxu0 %v1322
        %1448 = vmatpush.msra.mxu0 %v1318
        %1449 = vmatpush.msra.mxu0 %v1314
        %1450 = vmatpush.msra.mxu0 %v1310
        %1451 = vmatpush.msra.mxu0 %v1306
        %1452 = vmatpush.msra.mxu0 %v1302
        %1453 = vmatpush.msra.mxu0 %v1298
        %1454 = vmatmul.f32.gmra.mxu0 %v1293
        %v1455 = vpop.f32.mrf.mxu0
        %v1456 = vadd.f32 %v1364, %v1455
        %1457 = vmatmul.f32.gmra.mxu0 %v1294
        %v1458 = vpop.f32.mrf.mxu0
        %v1459 = vadd.f32 %v1364, %v1458
        %1460 = vdwg.mxu0
        %v1461 = vmul.f32 %v1387, 0.5
        %v1462 = vmul.f32 %v1410, 0.5
        %v1463 = vmul.f32 %v1433, 0.5
        %v1464 = vmul.f32 %v1456, 0.5
        %v1465 = vmul.f32 %v1390, 0.5
        %v1466 = vmul.f32 %v1413, 0.5
        %v1467 = vmul.f32 %v1436, 0.5
        %v1468 = vmul.f32 %v1459, 0.5
        %v1469 = vmul.f32 %v1387, 0.70710677
        %v1470 = vmul.f32 %v1410, 0.70710677
        %v1471 = vmul.f32 %v1433, 0.70710677
        %v1472 = vmul.f32 %v1456, 0.70710677
        %v1473 = vmul.f32 %v1390, 0.70710677
        %v1474 = vmul.f32 %v1413, 0.70710677
        %v1475 = vmul.f32 %v1436, 0.70710677
        %v1476 = vmul.f32 %v1459, 0.70710677
        %v1477 = vmul.f32 %v1469, %v1469
        %v1478 = vmin.f32 16.0, %v1477
        %v1479 = vmul.f32 %v1478, 2.1237322e-06
        %v1480 = vadd.f32 %v1479, 0.00028619796
        %v1481 = vmul.f32 %v1478, %v1480
        %v1482 = vadd.f32 %v1481, 0.0036580483
        %v1483 = vmul.f32 %v1478, %v1482
        %v1484 = vadd.f32 %v1483, 0.05243302
        %v1485 = vmul.f32 %v1478, %v1484
        %v1486 = vadd.f32 %v1485, 0.18741608
        %v1487 = vmul.f32 %v1478, %v1486
        %v1488 = vadd.f32 %v1487, 1.1283791
        %v1489 = vmul.f32 %v1469, %v1488
        %v1490 = vmul.f32 %v1478, 3.8918573e-05
        %v1491 = vadd.f32 %v1490, 0.001143296
        %v1492 = vmul.f32 %v1478, %v1491
        %v1493 = vadd.f32 %v1492, 0.014752088
        %v1494 = vmul.f32 %v1478, %v1493
        %v1495 = vadd.f32 %v1494, 0.112945676
        %v1496 = vmul.f32 %v1478, %v1495
        %v1497 = vadd.f32 %v1496, 0.4994258
        %v1498 = vmul.f32 %v1478, %v1497
        %v1499 = vadd.f32 %v1498, 1.0
        %v1500 = vrcp.pop %v1499
        %v1501 = vmul.f32 %v1499, %v1500
        %v1502 = vsub.f32 1.0, %v1501
        %v1503 = vmul.f32 %v1500, %v1502
        %v1504 = vadd.f32 %v1500, %v1503
        %vm1505 = vweird.f32 %v1499
        %vm1506 = vweird.f32 %v1500
        %vm1507 = vmor %vm1505, %vm1506
        %v1508 = vsel %vm1507, %v1500, %v1504
        %v1509 = vand.u32 2147483647, %v1499
        %vm1510 = vcmp.eq.f32.partialorder %v1509, 8.507059e+37
        %v1511 = vand.u32 %v1499, 2147483648
        %v1512 = vor.u32 1.1754944e-38, %v1511
        %v1513 = vsel %vm1510, %v1512, %v1508
        %v1514 = vmul.f32 %v1489, %v1513
        %v1515 = vmin.f32 %v1514, 1.0
        %v1516 = vmax.f32 %v1515, -1.0
        %v1517 = vmul.f32 %v1470, %v1470
        %v1518 = vmin.f32 16.0, %v1517
        %v1519 = vmul.f32 %v1518, 2.1237322e-06
        %v1520 = vadd.f32 %v1519, 0.00028619796
        %v1521 = vmul.f32 %v1518, %v1520
        %v1522 = vadd.f32 %v1521, 0.0036580483
        %v1523 = vmul.f32 %v1518, %v1522
        %v1524 = vadd.f32 %v1523, 0.05243302
        %v1525 = vmul.f32 %v1518, %v1524
        %v1526 = vadd.f32 %v1525, 0.18741608
        %v1527 = vmul.f32 %v1518, %v1526
        %v1528 = vadd.f32 %v1527, 1.1283791
        %v1529 = vmul.f32 %v1470, %v1528
        %v1530 = vmul.f32 %v1518, 3.8918573e-05
        %v1531 = vadd.f32 %v1530, 0.001143296
        %v1532 = vmul.f32 %v1518, %v1531
        %v1533 = vadd.f32 %v1532, 0.014752088
        %v1534 = vmul.f32 %v1518, %v1533
        %v1535 = vadd.f32 %v1534, 0.112945676
        %v1536 = vmul.f32 %v1518, %v1535
        %v1537 = vadd.f32 %v1536, 0.4994258
        %v1538 = vmul.f32 %v1518, %v1537
        %v1539 = vadd.f32 %v1538, 1.0
        %v1540 = vrcp.pop %v1539
        %v1541 = vmul.f32 %v1539, %v1540
        %v1542 = vsub.f32 1.0, %v1541
        %v1543 = vmul.f32 %v1540, %v1542
        %v1544 = vadd.f32 %v1540, %v1543
        %vm1545 = vweird.f32 %v1539
        %vm1546 = vweird.f32 %v1540
        %vm1547 = vmor %vm1545, %vm1546
        %v1548 = vsel %vm1547, %v1540, %v1544
        %v1549 = vand.u32 2147483647, %v1539
        %vm1550 = vcmp.eq.f32.partialorder %v1549, 8.507059e+37
        %v1551 = vand.u32 %v1539, 2147483648
        %v1552 = vor.u32 1.1754944e-38, %v1551
        %v1553 = vsel %vm1550, %v1552, %v1548
        %v1554 = vmul.f32 %v1529, %v1553
        %v1555 = vmin.f32 %v1554, 1.0
        %v1556 = vmax.f32 %v1555, -1.0
        %v1557 = vmul.f32 %v1471, %v1471
        %v1558 = vmin.f32 16.0, %v1557
        %v1559 = vmul.f32 %v1558, 2.1237322e-06
        %v1560 = vadd.f32 %v1559, 0.00028619796
        %v1561 = vmul.f32 %v1558, %v1560
        %v1562 = vadd.f32 %v1561, 0.0036580483
        %v1563 = vmul.f32 %v1558, %v1562
        %v1564 = vadd.f32 %v1563, 0.05243302
        %v1565 = vmul.f32 %v1558, %v1564
        %v1566 = vadd.f32 %v1565, 0.18741608
        %v1567 = vmul.f32 %v1558, %v1566
        %v1568 = vadd.f32 %v1567, 1.1283791
        %v1569 = vmul.f32 %v1471, %v1568
        %v1570 = vmul.f32 %v1558, 3.8918573e-05
        %v1571 = vadd.f32 %v1570, 0.001143296
        %v1572 = vmul.f32 %v1558, %v1571
        %v1573 = vadd.f32 %v1572, 0.014752088
        %v1574 = vmul.f32 %v1558, %v1573
        %v1575 = vadd.f32 %v1574, 0.112945676
        %v1576 = vmul.f32 %v1558, %v1575
        %v1577 = vadd.f32 %v1576, 0.4994258
        %v1578 = vmul.f32 %v1558, %v1577
        %v1579 = vadd.f32 %v1578, 1.0
        %v1580 = vrcp.pop %v1579
        %v1581 = vmul.f32 %v1579, %v1580
        %v1582 = vsub.f32 1.0, %v1581
        %v1583 = vmul.f32 %v1580, %v1582
        %v1584 = vadd.f32 %v1580, %v1583
        %vm1585 = vweird.f32 %v1579
        %vm1586 = vweird.f32 %v1580
        %vm1587 = vmor %vm1585, %vm1586
        %v1588 = vsel %vm1587, %v1580, %v1584
        %v1589 = vand.u32 2147483647, %v1579
        %vm1590 = vcmp.eq.f32.partialorder %v1589, 8.507059e+37
        %v1591 = vand.u32 %v1579, 2147483648
        %v1592 = vor.u32 1.1754944e-38, %v1591
        %v1593 = vsel %vm1590, %v1592, %v1588
        %v1594 = vmul.f32 %v1569, %v1593
        %v1595 = vmin.f32 %v1594, 1.0
        %v1596 = vmax.f32 %v1595, -1.0
        %v1597 = vmul.f32 %v1472, %v1472
        %v1598 = vmin.f32 16.0, %v1597
        %v1599 = vmul.f32 %v1598, 2.1237322e-06
        %v1600 = vadd.f32 %v1599, 0.00028619796
        %v1601 = vmul.f32 %v1598, %v1600
        %v1602 = vadd.f32 %v1601, 0.0036580483
        %v1603 = vmul.f32 %v1598, %v1602
        %v1604 = vadd.f32 %v1603, 0.05243302
        %v1605 = vmul.f32 %v1598, %v1604
        %v1606 = vadd.f32 %v1605, 0.18741608
        %v1607 = vmul.f32 %v1598, %v1606
        %v1608 = vadd.f32 %v1607, 1.1283791
        %v1609 = vmul.f32 %v1472, %v1608
        %v1610 = vmul.f32 %v1598, 3.8918573e-05
        %v1611 = vadd.f32 %v1610, 0.001143296
        %v1612 = vmul.f32 %v1598, %v1611
        %v1613 = vadd.f32 %v1612, 0.014752088
        %v1614 = vmul.f32 %v1598, %v1613
        %v1615 = vadd.f32 %v1614, 0.112945676
        %v1616 = vmul.f32 %v1598, %v1615
        %v1617 = vadd.f32 %v1616, 0.4994258
        %v1618 = vmul.f32 %v1598, %v1617
        %v1619 = vadd.f32 %v1618, 1.0
        %v1620 = vrcp.pop %v1619
        %v1621 = vmul.f32 %v1619, %v1620
        %v1622 = vsub.f32 1.0, %v1621
        %v1623 = vmul.f32 %v1620, %v1622
        %v1624 = vadd.f32 %v1620, %v1623
        %vm1625 = vweird.f32 %v1619
        %vm1626 = vweird.f32 %v1620
        %vm1627 = vmor %vm1625, %vm1626
        %v1628 = vsel %vm1627, %v1620, %v1624
        %v1629 = vand.u32 2147483647, %v1619
        %vm1630 = vcmp.eq.f32.partialorder %v1629, 8.507059e+37
        %v1631 = vand.u32 %v1619, 2147483648
        %v1632 = vor.u32 1.1754944e-38, %v1631
        %v1633 = vsel %vm1630, %v1632, %v1628
        %v1634 = vmul.f32 %v1609, %v1633
        %v1635 = vmin.f32 %v1634, 1.0
        %v1636 = vmax.f32 %v1635, -1.0
        %v1637 = vmul.f32 %v1473, %v1473
        %v1638 = vmin.f32 16.0, %v1637
        %v1639 = vmul.f32 %v1638, 2.1237322e-06
        %v1640 = vadd.f32 %v1639, 0.00028619796
        %v1641 = vmul.f32 %v1638, %v1640
        %v1642 = vadd.f32 %v1641, 0.0036580483
        %v1643 = vmul.f32 %v1638, %v1642
        %v1644 = vadd.f32 %v1643, 0.05243302
        %v1645 = vmul.f32 %v1638, %v1644
        %v1646 = vadd.f32 %v1645, 0.18741608
        %v1647 = vmul.f32 %v1638, %v1646
        %v1648 = vadd.f32 %v1647, 1.1283791
        %v1649 = vmul.f32 %v1473, %v1648
        %v1650 = vmul.f32 %v1638, 3.8918573e-05
        %v1651 = vadd.f32 %v1650, 0.001143296
        %v1652 = vmul.f32 %v1638, %v1651
        %v1653 = vadd.f32 %v1652, 0.014752088
        %v1654 = vmul.f32 %v1638, %v1653
        %v1655 = vadd.f32 %v1654, 0.112945676
        %v1656 = vmul.f32 %v1638, %v1655
        %v1657 = vadd.f32 %v1656, 0.4994258
        %v1658 = vmul.f32 %v1638, %v1657
        %v1659 = vadd.f32 %v1658, 1.0
        %v1660 = vrcp.pop %v1659
        %v1661 = vmul.f32 %v1659, %v1660
        %v1662 = vsub.f32 1.0, %v1661
        %v1663 = vmul.f32 %v1660, %v1662
        %v1664 = vadd.f32 %v1660, %v1663
        %vm1665 = vweird.f32 %v1659
        %vm1666 = vweird.f32 %v1660
        %vm1667 = vmor %vm1665, %vm1666
        %v1668 = vsel %vm1667, %v1660, %v1664
        %v1669 = vand.u32 2147483647, %v1659
        %vm1670 = vcmp.eq.f32.partialorder %v1669, 8.507059e+37
        %v1671 = vand.u32 %v1659, 2147483648
        %v1672 = vor.u32 1.1754944e-38, %v1671
        %v1673 = vsel %vm1670, %v1672, %v1668
        %v1674 = vmul.f32 %v1649, %v1673
        %v1675 = vmin.f32 %v1674, 1.0
        %v1676 = vmax.f32 %v1675, -1.0
        %v1677 = vmul.f32 %v1474, %v1474
        %v1678 = vmin.f32 16.0, %v1677
        %v1679 = vmul.f32 %v1678, 2.1237322e-06
        %v1680 = vadd.f32 %v1679, 0.00028619796
        %v1681 = vmul.f32 %v1678, %v1680
        %v1682 = vadd.f32 %v1681, 0.0036580483
        %v1683 = vmul.f32 %v1678, %v1682
        %v1684 = vadd.f32 %v1683, 0.05243302
        %v1685 = vmul.f32 %v1678, %v1684
        %v1686 = vadd.f32 %v1685, 0.18741608
        %v1687 = vmul.f32 %v1678, %v1686
        %v1688 = vadd.f32 %v1687, 1.1283791
        %v1689 = vmul.f32 %v1474, %v1688
        %v1690 = vmul.f32 %v1678, 3.8918573e-05
        %v1691 = vadd.f32 %v1690, 0.001143296
        %v1692 = vmul.f32 %v1678, %v1691
        %v1693 = vadd.f32 %v1692, 0.014752088
        %v1694 = vmul.f32 %v1678, %v1693
        %v1695 = vadd.f32 %v1694, 0.112945676
        %v1696 = vmul.f32 %v1678, %v1695
        %v1697 = vadd.f32 %v1696, 0.4994258
        %v1698 = vmul.f32 %v1678, %v1697
        %v1699 = vadd.f32 %v1698, 1.0
        %v1700 = vrcp.pop %v1699
        %v1701 = vmul.f32 %v1699, %v1700
        %v1702 = vsub.f32 1.0, %v1701
        %v1703 = vmul.f32 %v1700, %v1702
        %v1704 = vadd.f32 %v1700, %v1703
        %vm1705 = vweird.f32 %v1699
        %vm1706 = vweird.f32 %v1700
        %vm1707 = vmor %vm1705, %vm1706
        %v1708 = vsel %vm1707, %v1700, %v1704
        %v1709 = vand.u32 2147483647, %v1699
        %vm1710 = vcmp.eq.f32.partialorder %v1709, 8.507059e+37
        %v1711 = vand.u32 %v1699, 2147483648
        %v1712 = vor.u32 1.1754944e-38, %v1711
        %v1713 = vsel %vm1710, %v1712, %v1708
        %v1714 = vmul.f32 %v1689, %v1713
        %v1715 = vmin.f32 %v1714, 1.0
        %v1716 = vmax.f32 %v1715, -1.0
        %v1717 = vmul.f32 %v1475, %v1475
        %v1718 = vmin.f32 16.0, %v1717
        %v1719 = vmul.f32 %v1718, 2.1237322e-06
        %v1720 = vadd.f32 %v1719, 0.00028619796
        %v1721 = vmul.f32 %v1718, %v1720
        %v1722 = vadd.f32 %v1721, 0.0036580483
        %v1723 = vmul.f32 %v1718, %v1722
        %v1724 = vadd.f32 %v1723, 0.05243302
        %v1725 = vmul.f32 %v1718, %v1724
        %v1726 = vadd.f32 %v1725, 0.18741608
        %v1727 = vmul.f32 %v1718, %v1726
        %v1728 = vadd.f32 %v1727, 1.1283791
        %v1729 = vmul.f32 %v1475, %v1728
        %v1730 = vmul.f32 %v1718, 3.8918573e-05
        %v1731 = vadd.f32 %v1730, 0.001143296
        %v1732 = vmul.f32 %v1718, %v1731
        %v1733 = vadd.f32 %v1732, 0.014752088
        %v1734 = vmul.f32 %v1718, %v1733
        %v1735 = vadd.f32 %v1734, 0.112945676
        %v1736 = vmul.f32 %v1718, %v1735
        %v1737 = vadd.f32 %v1736, 0.4994258
        %v1738 = vmul.f32 %v1718, %v1737
        %v1739 = vadd.f32 %v1738, 1.0
        %v1740 = vrcp.pop %v1739
        %v1741 = vmul.f32 %v1739, %v1740
        %v1742 = vsub.f32 1.0, %v1741
        %v1743 = vmul.f32 %v1740, %v1742
        %v1744 = vadd.f32 %v1740, %v1743
        %vm1745 = vweird.f32 %v1739
        %vm1746 = vweird.f32 %v1740
        %vm1747 = vmor %vm1745, %vm1746
        %v1748 = vsel %vm1747, %v1740, %v1744
        %v1749 = vand.u32 2147483647, %v1739
        %vm1750 = vcmp.eq.f32.partialorder %v1749, 8.507059e+37
        %v1751 = vand.u32 %v1739, 2147483648
        %v1752 = vor.u32 1.1754944e-38, %v1751
        %v1753 = vsel %vm1750, %v1752, %v1748
        %v1754 = vmul.f32 %v1729, %v1753
        %v1755 = vmin.f32 %v1754, 1.0
        %v1756 = vmax.f32 %v1755, -1.0
        %v1757 = vmul.f32 %v1476, %v1476
        %v1758 = vmin.f32 16.0, %v1757
        %v1759 = vmul.f32 %v1758, 2.1237322e-06
        %v1760 = vadd.f32 %v1759, 0.00028619796
        %v1761 = vmul.f32 %v1758, %v1760
        %v1762 = vadd.f32 %v1761, 0.0036580483
        %v1763 = vmul.f32 %v1758, %v1762
        %v1764 = vadd.f32 %v1763, 0.05243302
        %v1765 = vmul.f32 %v1758, %v1764
        %v1766 = vadd.f32 %v1765, 0.18741608
        %v1767 = vmul.f32 %v1758, %v1766
        %v1768 = vadd.f32 %v1767, 1.1283791
        %v1769 = vmul.f32 %v1476, %v1768
        %v1770 = vmul.f32 %v1758, 3.8918573e-05
        %v1771 = vadd.f32 %v1770, 0.001143296
        %v1772 = vmul.f32 %v1758, %v1771
        %v1773 = vadd.f32 %v1772, 0.014752088
        %v1774 = vmul.f32 %v1758, %v1773
        %v1775 = vadd.f32 %v1774, 0.112945676
        %v1776 = vmul.f32 %v1758, %v1775
        %v1777 = vadd.f32 %v1776, 0.4994258
        %v1778 = vmul.f32 %v1758, %v1777
        %v1779 = vadd.f32 %v1778, 1.0
        %v1780 = vrcp.pop %v1779
        %v1781 = vmul.f32 %v1779, %v1780
        %v1782 = vsub.f32 1.0, %v1781
        %v1783 = vmul.f32 %v1780, %v1782
        %v1784 = vadd.f32 %v1780, %v1783
        %vm1785 = vweird.f32 %v1779
        %vm1786 = vweird.f32 %v1780
        %vm1787 = vmor %vm1785, %vm1786
        %v1788 = vsel %vm1787, %v1780, %v1784
        %v1789 = vand.u32 2147483647, %v1779
        %vm1790 = vcmp.eq.f32.partialorder %v1789, 8.507059e+37
        %v1791 = vand.u32 %v1779, 2147483648
        %v1792 = vor.u32 1.1754944e-38, %v1791
        %v1793 = vsel %vm1790, %v1792, %v1788
        %v1794 = vmul.f32 %v1769, %v1793
        %v1795 = vmin.f32 %v1794, 1.0
        %v1796 = vmax.f32 %v1795, -1.0
        %v1797 = vadd.f32 %v1516, 1.0
        %v1798 = vadd.f32 %v1556, 1.0
        %v1799 = vadd.f32 %v1596, 1.0
        %v1800 = vadd.f32 %v1636, 1.0
        %v1801 = vadd.f32 %v1676, 1.0
        %v1802 = vadd.f32 %v1716, 1.0
        %v1803 = vadd.f32 %v1756, 1.0
        %v1804 = vadd.f32 %v1796, 1.0
        %v1805 = vmul.f32 %v1461, %v1797
        %v1806 = vmul.f32 %v1462, %v1798
        %v1807 = vmul.f32 %v1463, %v1799
        %v1808 = vmul.f32 %v1464, %v1800
        %v1809 = vmul.f32 %v1465, %v1801
        %v1810 = vmul.f32 %v1466, %v1802
        %v1811 = vmul.f32 %v1467, %v1803
        %v1812 = vmul.f32 %v1468, %v1804
        %v1813 = vld [vmem:[#allocation17] sm:$0xff]
        %v1814 = vld [vmem:[#allocation17 + $0x8] sm:$0xff]
        %v1815 = vld [vmem:[#allocation17 + $0x10] sm:$0xff]
        %v1816 = vld [vmem:[#allocation17 + $0x18] sm:$0xff]
        %v1817 = vld [vmem:[#allocation17 + $0x20] sm:$0xff]
        %v1818 = vld [vmem:[#allocation17 + $0x28] sm:$0xff]
        %v1819 = vld [vmem:[#allocation17 + $0x30] sm:$0xff]
        %v1820 = vld [vmem:[#allocation17 + $0x38] sm:$0xff]
        %v1821 = vld [vmem:[#allocation17 + $0x40] sm:$0xff]
        %v1822 = vld [vmem:[#allocation17 + $0x48] sm:$0xff]
        %v1823 = vld [vmem:[#allocation17 + $0x50] sm:$0xff]
        %v1824 = vld [vmem:[#allocation17 + $0x58] sm:$0xff]
        %v1825 = vld [vmem:[#allocation17 + $0x60] sm:$0xff]
        %v1826 = vld [vmem:[#allocation17 + $0x68] sm:$0xff]
        %v1827 = vld [vmem:[#allocation17 + $0x70] sm:$0xff]
        %v1828 = vld [vmem:[#allocation17 + $0x78] sm:$0xff]
        %v1829 = vld [vmem:[#allocation17 + $0x80] sm:$0xff]
        %v1830 = vld [vmem:[#allocation17 + $0x88] sm:$0xff]
        %v1831 = vld [vmem:[#allocation17 + $0x90] sm:$0xff]
        %v1832 = vld [vmem:[#allocation17 + $0x98] sm:$0xff]
        %v1833 = vld [vmem:[#allocation17 + $0xa0] sm:$0xff]
        %v1834 = vld [vmem:[#allocation17 + $0xa8] sm:$0xff]
        %v1835 = vld [vmem:[#allocation17 + $0xb0] sm:$0xff]
        %v1836 = vld [vmem:[#allocation17 + $0xb8] sm:$0xff]
        %v1837 = vld [vmem:[#allocation17 + $0xc0] sm:$0xff]
        %v1838 = vld [vmem:[#allocation17 + $0xc8] sm:$0xff]
        %v1839 = vld [vmem:[#allocation17 + $0xd0] sm:$0xff]
        %v1840 = vld [vmem:[#allocation17 + $0xd8] sm:$0xff]
        %v1841 = vld [vmem:[#allocation17 + $0xe0] sm:$0xff]
        %v1842 = vld [vmem:[#allocation17 + $0xe8] sm:$0xff]
        %v1843 = vld [vmem:[#allocation17 + $0xf0] sm:$0xff]
        %v1844 = vld [vmem:[#allocation17 + $0xf8] sm:$0xff]
        %v1845 = vld [vmem:[#allocation17 + $0x100] sm:$0xff]
        %v1846 = vld [vmem:[#allocation17 + $0x108] sm:$0xff]
        %v1847 = vld [vmem:[#allocation17 + $0x110] sm:$0xff]
        %v1848 = vld [vmem:[#allocation17 + $0x118] sm:$0xff]
        %v1849 = vld [vmem:[#allocation17 + $0x120] sm:$0xff]
        %v1850 = vld [vmem:[#allocation17 + $0x128] sm:$0xff]
        %v1851 = vld [vmem:[#allocation17 + $0x130] sm:$0xff]
        %v1852 = vld [vmem:[#allocation17 + $0x138] sm:$0xff]
        %v1853 = vld [vmem:[#allocation17 + $0x140] sm:$0xff]
        %v1854 = vld [vmem:[#allocation17 + $0x148] sm:$0xff]
        %v1855 = vld [vmem:[#allocation17 + $0x150] sm:$0xff]
        %v1856 = vld [vmem:[#allocation17 + $0x158] sm:$0xff]
        %v1857 = vld [vmem:[#allocation17 + $0x160] sm:$0xff]
        %v1858 = vld [vmem:[#allocation17 + $0x168] sm:$0xff]
        %v1859 = vld [vmem:[#allocation17 + $0x170] sm:$0xff]
        %v1860 = vld [vmem:[#allocation17 + $0x178] sm:$0xff]
        %v1861 = vld [vmem:[#allocation17 + $0x180] sm:$0xff]
        %v1862 = vld [vmem:[#allocation17 + $0x188] sm:$0xff]
        %v1863 = vld [vmem:[#allocation17 + $0x190] sm:$0xff]
        %v1864 = vld [vmem:[#allocation17 + $0x198] sm:$0xff]
        %v1865 = vld [vmem:[#allocation17 + $0x1a0] sm:$0xff]
        %v1866 = vld [vmem:[#allocation17 + $0x1a8] sm:$0xff]
        %v1867 = vld [vmem:[#allocation17 + $0x1b0] sm:$0xff]
        %v1868 = vld [vmem:[#allocation17 + $0x1b8] sm:$0xff]
        %v1869 = vld [vmem:[#allocation17 + $0x1c0] sm:$0xff]
        %v1870 = vld [vmem:[#allocation17 + $0x1c8] sm:$0xff]
        %v1871 = vld [vmem:[#allocation17 + $0x1d0] sm:$0xff]
        %v1872 = vld [vmem:[#allocation17 + $0x1d8] sm:$0xff]
        %v1873 = vld [vmem:[#allocation17 + $0x1e0] sm:$0xff]
        %v1874 = vld [vmem:[#allocation17 + $0x1e8] sm:$0xff]
        %v1875 = vld [vmem:[#allocation17 + $0x1f0] sm:$0xff]
        %v1876 = vld [vmem:[#allocation17 + $0x1f8] sm:$0xff]
        %v1877 = vld [vmem:[%s12] sm:$0x1]
        %v1879 = vperm.slane %v1877, 0
        %1881 = vmatpush.msra.mxu0 %v1828
        %1882 = vmatpush.msra.mxu0 %v1827
        %1883 = vmatpush.msra.mxu0 %v1826
        %1884 = vmatpush.msra.mxu0 %v1825
        %1885 = vmatpush.msra.mxu0 %v1824
        %1886 = vmatpush.msra.mxu0 %v1823
        %1887 = vmatpush.msra.mxu0 %v1822
        %1888 = vmatpush.msra.mxu0 %v1821
        %1889 = vmatpush.msra.mxu0 %v1820
        %1890 = vmatpush.msra.mxu0 %v1819
        %1891 = vmatpush.msra.mxu0 %v1818
        %1892 = vmatpush.msra.mxu0 %v1817
        %1893 = vmatpush.msra.mxu0 %v1816
        %1894 = vmatpush.msra.mxu0 %v1815
        %1895 = vmatpush.msra.mxu0 %v1814
        %1896 = vmatpush.msra.mxu0 %v1813
        %1897 = vmatmul.f32.gmra.mxu0 %v1805
        %v1898 = vpop.f32.mrf.mxu0
        %v1899 = vadd.f32 %v1879, %v1898
        %1900 = vmatmul.f32.gmra.mxu0 %v1809
        %v1901 = vpop.f32.mrf.mxu0
        %v1902 = vadd.f32 %v1879, %v1901
        %1903 = vdwg.mxu0
        %1904 = vmatpush.msra.mxu0 %v1844
        %1905 = vmatpush.msra.mxu0 %v1843
        %1906 = vmatpush.msra.mxu0 %v1842
        %1907 = vmatpush.msra.mxu0 %v1841
        %1908 = vmatpush.msra.mxu0 %v1840
        %1909 = vmatpush.msra.mxu0 %v1839
        %1910 = vmatpush.msra.mxu0 %v1838
        %1911 = vmatpush.msra.mxu0 %v1837
        %1912 = vmatpush.msra.mxu0 %v1836
        %1913 = vmatpush.msra.mxu0 %v1835
        %1914 = vmatpush.msra.mxu0 %v1834
        %1915 = vmatpush.msra.mxu0 %v1833
        %1916 = vmatpush.msra.mxu0 %v1832
        %1917 = vmatpush.msra.mxu0 %v1831
        %1918 = vmatpush.msra.mxu0 %v1830
        %1919 = vmatpush.msra.mxu0 %v1829
        %1920 = vmatmul.f32.gmra.mxu0 %v1806
        %v1921 = vpop.f32.mrf.mxu0
        %v1922 = vadd.f32 %v1899, %v1921
        %1923 = vmatmul.f32.gmra.mxu0 %v1810
        %v1924 = vpop.f32.mrf.mxu0
        %v1925 = vadd.f32 %v1902, %v1924
        %1926 = vdwg.mxu0
        %1927 = vmatpush.msra.mxu0 %v1860
        %1928 = vmatpush.msra.mxu0 %v1859
        %1929 = vmatpush.msra.mxu0 %v1858
        %1930 = vmatpush.msra.mxu0 %v1857
        %1931 = vmatpush.msra.mxu0 %v1856
        %1932 = vmatpush.msra.mxu0 %v1855
        %1933 = vmatpush.msra.mxu0 %v1854
        %1934 = vmatpush.msra.mxu0 %v1853
        %1935 = vmatpush.msra.mxu0 %v1852
        %1936 = vmatpush.msra.mxu0 %v1851
        %1937 = vmatpush.msra.mxu0 %v1850
        %1938 = vmatpush.msra.mxu0 %v1849
        %1939 = vmatpush.msra.mxu0 %v1848
        %1940 = vmatpush.msra.mxu0 %v1847
        %1941 = vmatpush.msra.mxu0 %v1846
        %1942 = vmatpush.msra.mxu0 %v1845
        %1943 = vmatmul.f32.gmra.mxu0 %v1807
        %v1944 = vpop.f32.mrf.mxu0
        %v1945 = vadd.f32 %v1922, %v1944
        %1946 = vmatmul.f32.gmra.mxu0 %v1811
        %v1947 = vpop.f32.mrf.mxu0
        %v1948 = vadd.f32 %v1925, %v1947
        %1949 = vdwg.mxu0
        %1950 = vmatpush.msra.mxu0 %v1876
        %1951 = vmatpush.msra.mxu0 %v1875
        %1952 = vmatpush.msra.mxu0 %v1874
        %1953 = vmatpush.msra.mxu0 %v1873
        %1954 = vmatpush.msra.mxu0 %v1872
        %1955 = vmatpush.msra.mxu0 %v1871
        %1956 = vmatpush.msra.mxu0 %v1870
        %1957 = vmatpush.msra.mxu0 %v1869
        %1958 = vmatpush.msra.mxu0 %v1868
        %1959 = vmatpush.msra.mxu0 %v1867
        %1960 = vmatpush.msra.mxu0 %v1866
        %1961 = vmatpush.msra.mxu0 %v1865
        %1962 = vmatpush.msra.mxu0 %v1864
        %1963 = vmatpush.msra.mxu0 %v1863
        %1964 = vmatpush.msra.mxu0 %v1862
        %1965 = vmatpush.msra.mxu0 %v1861
        %1966 = vmatmul.f32.gmra.mxu0 %v1808
        %v1967 = vpop.f32.mrf.mxu0
        %v1968 = vadd.f32 %v1945, %v1967
        %1969 = vmatmul.f32.gmra.mxu0 %v1812
        %v1970 = vpop.f32.mrf.mxu0
        %v1971 = vadd.f32 %v1948, %v1970
        %1972 = vdwg.mxu0
        %v1973 = vadd.f32 %v1241, %v1968
        %v1974 = vadd.f32 %v1242, %v1971
        %1975 = vst [vmem:[%s599] sm:$0xff] %v1973
        %1976 = vst [vmem:[%s599 + $0x8] sm:$0xff] %v1974
        %s1977 = sand.u32 %s321, 1
        %s1978 = scalar_lea.sflag [#allocation4], %s1977
        %s1979 = sand.u32 %s321, 1
        %s1980 = smul.addr %s1979, 16
        %s1981 = scalar_lea.vmem [#allocation19], %s1980
        // Predicated region
        $region113: #{tpu_custom_call.1} parent=71 // pred_check
          %p1982 = pneg %p331
        $region114: #{tpu_custom_call.1} parent=71 // pred_check_branch
          %1984 = sbr.rel (%p1982) target = $region116
        $region115: #{tpu_custom_call.1} parent=71 // pred_region
          %1986 = vsyncadd %s1978, 0
          %s1987 = smul.addr %s35, 2
          %s1988 = smul.addr %s1987, 8
          %s1989 = scalar_lea.hbm %s13, %s1988
          %s1990 = sshll.u32 %s1981, 4
          %s1991 = int_to_ptr.vmem [resolvable:$true] %s1990
          %s1992 = sshll.u32 %s1989, 4
          %s1993 = int_to_ptr.hbm [resolvable:$true] %s1992
          %1998 = dma.vmem_to_hbm [thread:$0]  %s1991, 256, %s1993, %s1978, 128, 128, 8
        $region116: #{tpu_custom_call.1} parent=71 // pred_fallthru
          _
      $region72: #{tpu_custom_call.1} parent=5 // pred_fallthru
        _
      %p1999 = scmp.le.s32.totalorder 2, %s30
      // Predicated region
      $region117: #{tpu_custom_call.1} parent=5 // pred_check
        %p2000 = pneg %p1999
      $region118: #{tpu_custom_call.1} parent=5 // pred_check_branch
        %2002 = sbr.rel (%p2000) target = $region120
      $region119: #{tpu_custom_call.1} parent=5 // pred_region
        %s2003 = ssub.s32 %s30, 2
        // Predicated region
        $region121: #{tpu_custom_call.1} parent=119 // pred_check
          %p2004 = pneg %p337
        $region122: #{tpu_custom_call.1} parent=119 // pred_check_branch
          %2006 = sbr.rel (%p2004) target = $region124
        $region123: #{tpu_custom_call.1} parent=119 // pred_region
          %s2007 = sand.u32 %s322, 1
          %s2008 = scalar_lea.sflag [#allocation4], %s2007
          %s2009 = sand.u32 %s322, 1
          %s2010 = smul.addr %s2009, 16
          %s2011 = scalar_lea.vmem [#allocation19], %s2010
          %2013 = dma.done %s2008, 256
        $region124: #{tpu_custom_call.1} parent=119 // pred_fallthru
          _
      $region120: #{tpu_custom_call.1} parent=5 // pred_fallthru
        _
    $region6: #{tpu_custom_call.1} parent=1 // loop_footer
      %s34 = sadd.s32 1, %s30
    $region7: #{tpu_custom_call.1} parent=1 // loop_footer_branch
      %29 = sbr.rel target = $region3
    $region8: #{tpu_custom_call.1} parent=1 // loop_exit
      _
    %2014 = vsyncpa [#allocation3], 1
    %s2015 = scalar_lea.sflag [#allocation3], 1
    %2016 = vsyncpa %s2015, 1
    %2017 = vsyncpa [#allocation6], 1
    %2018 = vsyncpa [#allocation9], 1
    %2019 = vsyncpa [#allocation12], 1
    %2020 = vsyncpa [#allocation15], 1
    %2021 = vsyncpa [#allocation18], 1
    %2022 = vsyncpa [#allocation4], 1
    %s2023 = scalar_lea.sflag [#allocation4], 1
    %2024 = vsyncpa %s2023, 1

</llo_original>
